<compile_context>
chip_gen: v5e
topology: v5e:2x2
jax: 0.10.0
libtpu: 0.0.40
codegen_flags: <defaults>
</compile_context>

<pallas_src>
import functools

import jax
import jax.numpy as jnp
from jax import lax
from jax.experimental import pallas as pl
from jax.experimental.pallas import tpu as pltpu


# ---------------------------------------------------------------------------
# Fused kernel: L LSTM layers + tanh + fc head, all resident in VMEM.
# ---------------------------------------------------------------------------
def _fused_rnn_kernel(*refs, T, B, H, L):
    # refs = [x, (w_ih, w_hh, b) * L, w_fc, b_fc, out, gx_scratch, seq_scratch]
    x_ref = refs[0]
    layer_refs = refs[1:1 + 3 * L]
    w_fc_ref = refs[1 + 3 * L]
    b_fc_ref = refs[2 + 3 * L]
    out_ref = refs[3 + 3 * L]
    gx_ref = refs[4 + 3 * L]    # (T*B, 4H) precomputed input projection
    seq_ref = refs[5 + 3 * L]   # (T*B, H)  inter-layer activations (reused)

    h = jnp.zeros((B, H), jnp.float32)
    c = jnp.zeros((B, H), jnp.float32)

    for l in range(L):  # static Python loop over layers
        w_ih_ref, w_hh_ref, b_ref = layer_refs[3 * l: 3 * l + 3]

        # Hoisted input projection (+ bias): one big MXU matmul per layer.
        # For l > 0 this consumes the previous layer's output held in VMEM;
        # it is fully read here, so the time loop below may overwrite seq_ref.
        inp = x_ref[...] if l == 0 else seq_ref[...]
        gx_ref[...] = (jnp.dot(inp, w_ih_ref[...],
                               preferred_element_type=jnp.float32)
                       + b_ref[...])

        w_hh = w_hh_ref[...]  # load once, stays in vregs/VMEM for the loop
        h = jnp.zeros((B, H), jnp.float32)
        c = jnp.zeros((B, H), jnp.float32)

        def step(t, carry, _w_hh=w_hh):
            h, c = carry
            row = pl.multiple_of(t * B, B)  # sublane-aligned dynamic offset
            gates = gx_ref[pl.ds(row, B), :] + jnp.dot(
                h, _w_hh, preferred_element_type=jnp.float32)
            # PyTorch LSTM gate order: i, f, g, o.
            # TODO(synk): H=32 gate slices of a 128-lane vreg cost a small
            # lane relayout; padding H to 128 (or a (in,4,H) weight layout)
            # would remove it but is overkill at these shapes.
            i_g = jax.nn.sigmoid(gates[:, 0 * H:1 * H])
            f_g = jax.nn.sigmoid(gates[:, 1 * H:2 * H])
            g_g = jnp.tanh(gates[:, 2 * H:3 * H])
            o_g = jax.nn.sigmoid(gates[:, 3 * H:4 * H])
            c_new = f_g * c + i_g * g_g
            h_new = o_g * jnp.tanh(c_new)
            seq_ref[pl.ds(row, B), :] = h_new  # VMEM only, never hits HBM
            return (h_new, c_new)

        h, c = lax.fori_loop(0, T, step, (h, c), unroll=True)

    # Head fused in: result = tanh(h_last) @ W_fc + b_fc  (dropout = identity).
    out_ref[...] = (jnp.dot(jnp.tanh(h), w_fc_ref[...],
                            preferred_element_type=jnp.float32)
                    + b_fc_ref[...]).astype(out_ref.dtype)


def fused_rnn_pallas(x_tm_flat, lstm_layers, w_fc, b_fc, *, T, B, H):
    """x_tm_flat: (T*B, E) f32 time-major; lstm_layers: list of dicts with
    w_ih (in,4H), w_hh (H,4H), b (1,4H); w_fc (H,C); b_fc (1,C) -> (B, C)."""
    L = len(lstm_layers)
    C = w_fc.shape[1]

    inputs = [x_tm_flat]
    for layer in lstm_layers:
        inputs += [layer["w_ih"], layer["w_hh"], layer["b"]]
    inputs += [w_fc, b_fc]

    kernel = functools.partial(_fused_rnn_kernel, T=T, B=B, H=H, L=L)
    return pl.pallas_call(
        kernel,
        out_shape=jax.ShapeDtypeStruct((B, C), jnp.float32),
        # No grid: single invocation, everything resident in VMEM
        # (T*B*(E+4H+H)*4B is a few tens of KB at these shapes).
        scratch_shapes=[
            pltpu.VMEM((T * B, 4 * H), jnp.float32),  # gx (lane-dense: 4H=128)
            pltpu.VMEM((T * B, H), jnp.float32),      # inter-layer activations
        ],
    )(*inputs)


# ---------------------------------------------------------------------------
# Full RNN forward (eval mode: dropouts are identity)
# ---------------------------------------------------------------------------
def rnn_forward(token_ids, params):
    # Embedding lookup (glue, plain JAX gather).
    x = jnp.take(params["embedding"], token_ids, axis=0)  # (B, T, E)
    B, T, E = x.shape
    H = params["lstm"][0]["w_hh"].shape[0]
    # embed_dropout: identity in eval mode.
    x_tm = jnp.transpose(x, (1, 0, 2)).reshape(T * B, E).astype(jnp.float32)
    return fused_rnn_pallas(x_tm, params["lstm"], params["w_fc"],
                            params["b_fc"], T=T, B=B, H=H)


# ---------------------------------------------------------------------------
# Pure-JAX reference (for a silent correctness check)
# ---------------------------------------------------------------------------
def rnn_forward_ref(token_ids, params):
    x = jnp.take(params["embedding"], token_ids, axis=0).astype(jnp.float32)
    B = x.shape[0]
    for layer in params["lstm"]:
        H = layer["w_hh"].shape[0]

        def step(carry, x_t, layer=layer, H=H):
            h, c = carry
            gates = x_t @ layer["w_ih"] + h @ layer["w_hh"] + layer["b"][0]
            i = jax.nn.sigmoid(gates[:, 0 * H:1 * H])
            f = jax.nn.sigmoid(gates[:, 1 * H:2 * H])
            g = jnp.tanh(gates[:, 2 * H:3 * H])
            o = jax.nn.sigmoid(gates[:, 3 * H:4 * H])
            c = f * c + i * g
            h = o * jnp.tanh(c)
            return (h, c), h

        h0 = jnp.zeros((B, H), jnp.float32)
        (_, _), ys = lax.scan(step, (h0, h0), jnp.transpose(x, (1, 0, 2)))
        x = jnp.transpose(ys, (1, 0, 2))
    h_last = x[:, -1, :]
    return jnp.tanh(h_last) @ params["w_fc"] + params["b_fc"][0]


# ---------------------------------------------------------------------------
def make_params(key, tot_num, embed_size, hidden_size, layers, num_classes):
    keys = jax.random.split(key, 3 + 4 * layers)
    params = {}
    params["embedding"] = jax.random.normal(
        keys[0], (tot_num, embed_size), jnp.float32) * 0.1
    lstm_params = []
    scale = 1.0 / jnp.sqrt(hidden_size)
    for l in range(layers):
        in_size = embed_size if l == 0 else hidden_size
        k0, k1, k2, k3 = keys[1 + 4 * l: 5 + 4 * l]
        w_ih = jax.random.uniform(k0, (in_size, 4 * hidden_size),
                                  jnp.float32, -scale, scale)
        w_hh = jax.random.uniform(k1, (hidden_size, 4 * hidden_size),
                                  jnp.float32, -scale, scale)
        b_ih = jax.random.uniform(k2, (4 * hidden_size,), jnp.float32,
                                  -scale, scale)
        b_hh = jax.random.uniform(k3, (4 * hidden_size,), jnp.float32,
                                  -scale, scale)
        lstm_params.append({"w_ih": w_ih, "w_hh": w_hh,
                            "b": (b_ih + b_hh)[None, :]})
    params["lstm"] = lstm_params
    params["w_fc"] = jax.random.normal(
        keys[-2], (hidden_size, num_classes), jnp.float32) * 0.1
    params["b_fc"] = jnp.zeros((1, num_classes), jnp.float32)
    return params


if __name__ == "__main__":
    # Small shapes consistent with the module's forward:
    # token ids (B, T) -> embedding (B, T, E) -> L-layer LSTM -> tanh -> fc.
    B, T, E, H, L, V, C = 8, 8, 32, 32, 2, 50, 4

    key = jax.random.PRNGKey(0)
    kp, kx = jax.random.split(key)
    params = make_params(kp, V, E, H, L, C)
    token_ids = jax.random.randint(kx, (B, T), 0, V, dtype=jnp.int32)

    out = jax.block_until_ready(rnn_forward(token_ids, params))
    ref = jax.block_until_ready(rnn_forward_ref(token_ids, params))
    assert out.shape == (B, C)
    assert jnp.allclose(out, ref, atol=1e-4, rtol=1e-4)

    print("KERNEL_OK")
</pallas_src>

<mosaic_0001>
module attributes {stable_mosaic.version = 11 : i64} {
  func.func @_fused_rnn_kernel(%arg0: memref<64x32xf32, #tpu.memory_space<vmem>>, %arg1: memref<32x128xf32, #tpu.memory_space<vmem>>, %arg2: memref<32x128xf32, #tpu.memory_space<vmem>>, %arg3: memref<1x128xf32, #tpu.memory_space<vmem>>, %arg4: memref<32x128xf32, #tpu.memory_space<vmem>>, %arg5: memref<32x128xf32, #tpu.memory_space<vmem>>, %arg6: memref<1x128xf32, #tpu.memory_space<vmem>>, %arg7: memref<32x4xf32, #tpu.memory_space<vmem>>, %arg8: memref<1x4xf32, #tpu.memory_space<vmem>>, %arg9: memref<8x4xf32, #tpu.memory_space<vmem>>, %arg10: memref<64x128xf32, #tpu.memory_space<vmem>>, %arg11: memref<64x32xf32, #tpu.memory_space<vmem>>) attributes {dimension_semantics = [], scalar_prefetch = 0 : i64, scratch_operands = 2 : i64, tpu.core_type = #tpu.core_type<tc>} {
    %c0 = arith.constant 0 : index
    %c0_0 = arith.constant 0 : index
    %0 = vector.load %arg0[%c0, %c0_0] : memref<64x32xf32, #tpu.memory_space<vmem>>, vector<64x32xf32>
    %c0_1 = arith.constant 0 : index
    %c0_2 = arith.constant 0 : index
    %1 = vector.load %arg1[%c0_1, %c0_2] : memref<32x128xf32, #tpu.memory_space<vmem>>, vector<32x128xf32>
    %cst = arith.constant dense<0.000000e+00> : vector<64x128xf32>
    %2 = tpu.matmul %0, %1, %cst {dimension_numbers = #tpu.dot_dimension_numbers<[1], [0], [0], [1], [0, 0, 1, 1], [], []>} : vector<64x32xf32>, vector<32x128xf32>, vector<64x128xf32> -> vector<64x128xf32>
    %c0_3 = arith.constant 0 : index
    %c0_4 = arith.constant 0 : index
    %3 = vector.load %arg3[%c0_3, %c0_4] : memref<1x128xf32, #tpu.memory_space<vmem>>, vector<1x128xf32>
    %4 = vector.broadcast %3 : vector<1x128xf32> to vector<64x128xf32>
    %5 = arith.addf %2, %4 : vector<64x128xf32>
    %c0_5 = arith.constant 0 : index
    %c0_6 = arith.constant 0 : index
    %6 = vector.load %arg10[%c0_5, %c0_6] : memref<64x128xf32, #tpu.memory_space<vmem>>, vector<64x128xf32>
    tpu.vector_store %arg10[%c0_5, %c0_6], %5 {strides = array<i32>} : memref<64x128xf32, #tpu.memory_space<vmem>>, vector<64x128xf32>,
    %c0_7 = arith.constant 0 : index
    %c0_8 = arith.constant 0 : index
    %7 = vector.load %arg2[%c0_7, %c0_8] : memref<32x128xf32, #tpu.memory_space<vmem>>, vector<32x128xf32>
    %cst_9 = arith.constant 0.000000e+00 : f32
    %8 = vector.broadcast %cst_9 : f32 to vector<8x32xf32>
    %cst_10 = arith.constant 0.000000e+00 : f32
    %9 = vector.broadcast %cst_10 : f32 to vector<8x32xf32>
    %c0_i32 = arith.constant 0 : i32
    %c8_i32 = arith.constant 8 : i32
    %10 = arith.muli %c0_i32, %c8_i32 : i32
    %11 = tpu.assume_multiple %10, 8 : i32
    %12 = arith.index_cast %11 : i32 to index
    %c0_11 = arith.constant 0 : index
    %13 = vector.load %arg10[%12, %c0_11] : memref<64x128xf32, #tpu.memory_space<vmem>>, vector<8x128xf32>
    %cst_12 = arith.constant dense<0.000000e+00> : vector<8x128xf32>
    %14 = tpu.matmul %8, %7, %cst_12 {dimension_numbers = #tpu.dot_dimension_numbers<[1], [0], [0], [1], [0, 0, 1, 1], [], []>} : vector<8x32xf32>, vector<32x128xf32>, vector<8x128xf32> -> vector<8x128xf32>
    %15 = arith.addf %13, %14 : vector<8x128xf32>
    %16 = vector.extract_strided_slice %15 {offsets = [0, 0], sizes = [8, 32], strides = [1, 1]} : vector<8x128xf32> to vector<8x32xf32>
    %17 = arith.negf %16 : vector<8x32xf32>
    %18 = math.exp %17 : vector<8x32xf32>
    %cst_13 = arith.constant 1.000000e+00 : f32
    %19 = vector.broadcast %cst_13 : f32 to vector<8x32xf32>
    %20 = arith.addf %19, %18 : vector<8x32xf32>
    %21 = arith.divf %19, %20 : vector<8x32xf32>
    %22 = vector.extract_strided_slice %15 {offsets = [0, 32], sizes = [8, 32], strides = [1, 1]} : vector<8x128xf32> to vector<8x32xf32>
    %23 = arith.negf %22 : vector<8x32xf32>
    %24 = math.exp %23 : vector<8x32xf32>
    %cst_14 = arith.constant 1.000000e+00 : f32
    %25 = vector.broadcast %cst_14 : f32 to vector<8x32xf32>
    %26 = arith.addf %25, %24 : vector<8x32xf32>
    %27 = arith.divf %25, %26 : vector<8x32xf32>
    %28 = vector.extract_strided_slice %15 {offsets = [0, 64], sizes = [8, 32], strides = [1, 1]} : vector<8x128xf32> to vector<8x32xf32>
    %29 = math.tanh %28 : vector<8x32xf32>
    %30 = vector.extract_strided_slice %15 {offsets = [0, 96], sizes = [8, 32], strides = [1, 1]} : vector<8x128xf32> to vector<8x32xf32>
    %31 = arith.negf %30 : vector<8x32xf32>
    %32 = math.exp %31 : vector<8x32xf32>
    %cst_15 = arith.constant 1.000000e+00 : f32
    %33 = vector.broadcast %cst_15 : f32 to vector<8x32xf32>
    %34 = arith.addf %33, %32 : vector<8x32xf32>
    %35 = arith.divf %33, %34 : vector<8x32xf32>
    %36 = arith.mulf %27, %9 : vector<8x32xf32>
    %37 = arith.mulf %21, %29 : vector<8x32xf32>
    %38 = arith.addf %36, %37 : vector<8x32xf32>
    %39 = math.tanh %38 : vector<8x32xf32>
    %40 = arith.mulf %35, %39 : vector<8x32xf32>
    %41 = arith.index_cast %11 : i32 to index
    %c0_16 = arith.constant 0 : index
    %42 = vector.load %arg11[%41, %c0_16] : memref<64x32xf32, #tpu.memory_space<vmem>>, vector<8x32xf32>
    tpu.vector_store %arg11[%41, %c0_16], %40 {strides = array<i32>} : memref<64x32xf32, #tpu.memory_space<vmem>>, vector<8x32xf32>,
    %c1_i32 = arith.constant 1 : i32
    %c8_i32_17 = arith.constant 8 : i32
    %43 = arith.muli %c1_i32, %c8_i32_17 : i32
    %44 = tpu.assume_multiple %43, 8 : i32
    %45 = arith.index_cast %44 : i32 to index
    %c0_18 = arith.constant 0 : index
    %46 = vector.load %arg10[%45, %c0_18] : memref<64x128xf32, #tpu.memory_space<vmem>>, vector<8x128xf32>
    %cst_19 = arith.constant dense<0.000000e+00> : vector<8x128xf32>
    %47 = tpu.matmul %40, %7, %cst_19 {dimension_numbers = #tpu.dot_dimension_numbers<[1], [0], [0], [1], [0, 0, 1, 1], [], []>} : vector<8x32xf32>, vector<32x128xf32>, vector<8x128xf32> -> vector<8x128xf32>
    %48 = arith.addf %46, %47 : vector<8x128xf32>
    %49 = vector.extract_strided_slice %48 {offsets = [0, 0], sizes = [8, 32], strides = [1, 1]} : vector<8x128xf32> to vector<8x32xf32>
    %50 = arith.negf %49 : vector<8x32xf32>
    %51 = math.exp %50 : vector<8x32xf32>
    %cst_20 = arith.constant 1.000000e+00 : f32
    %52 = vector.broadcast %cst_20 : f32 to vector<8x32xf32>
    %53 = arith.addf %52, %51 : vector<8x32xf32>
    %54 = arith.divf %52, %53 : vector<8x32xf32>
    %55 = vector.extract_strided_slice %48 {offsets = [0, 32], sizes = [8, 32], strides = [1, 1]} : vector<8x128xf32> to vector<8x32xf32>
    %56 = arith.negf %55 : vector<8x32xf32>
    %57 = math.exp %56 : vector<8x32xf32>
    %cst_21 = arith.constant 1.000000e+00 : f32
    %58 = vector.broadcast %cst_21 : f32 to vector<8x32xf32>
    %59 = arith.addf %58, %57 : vector<8x32xf32>
    %60 = arith.divf %58, %59 : vector<8x32xf32>
    %61 = vector.extract_strided_slice %48 {offsets = [0, 64], sizes = [8, 32], strides = [1, 1]} : vector<8x128xf32> to vector<8x32xf32>
    %62 = math.tanh %61 : vector<8x32xf32>
    %63 = vector.extract_strided_slice %48 {offsets = [0, 96], sizes = [8, 32], strides = [1, 1]} : vector<8x128xf32> to vector<8x32xf32>
    %64 = arith.negf %63 : vector<8x32xf32>
    %65 = math.exp %64 : vector<8x32xf32>
    %cst_22 = arith.constant 1.000000e+00 : f32
    %66 = vector.broadcast %cst_22 : f32 to vector<8x32xf32>
    %67 = arith.addf %66, %65 : vector<8x32xf32>
    %68 = arith.divf %66, %67 : vector<8x32xf32>
    %69 = arith.mulf %60, %38 : vector<8x32xf32>
    %70 = arith.mulf %54, %62 : vector<8x32xf32>
    %71 = arith.addf %69, %70 : vector<8x32xf32>
    %72 = math.tanh %71 : vector<8x32xf32>
    %73 = arith.mulf %68, %72 : vector<8x32xf32>
    %74 = arith.index_cast %44 : i32 to index
    %c0_23 = arith.constant 0 : index
    %75 = vector.load %arg11[%74, %c0_23] : memref<64x32xf32, #tpu.memory_space<vmem>>, vector<8x32xf32>
    tpu.vector_store %arg11[%74, %c0_23], %73 {strides = array<i32>} : memref<64x32xf32, #tpu.memory_space<vmem>>, vector<8x32xf32>,
    %c2_i32 = arith.constant 2 : i32
    %c8_i32_24 = arith.constant 8 : i32
    %76 = arith.muli %c2_i32, %c8_i32_24 : i32
    %77 = tpu.assume_multiple %76, 8 : i32
    %78 = arith.index_cast %77 : i32 to index
    %c0_25 = arith.constant 0 : index
    %79 = vector.load %arg10[%78, %c0_25] : memref<64x128xf32, #tpu.memory_space<vmem>>, vector<8x128xf32>
    %cst_26 = arith.constant dense<0.000000e+00> : vector<8x128xf32>
    %80 = tpu.matmul %73, %7, %cst_26 {dimension_numbers = #tpu.dot_dimension_numbers<[1], [0], [0], [1], [0, 0, 1, 1], [], []>} : vector<8x32xf32>, vector<32x128xf32>, vector<8x128xf32> -> vector<8x128xf32>
    %81 = arith.addf %79, %80 : vector<8x128xf32>
    %82 = vector.extract_strided_slice %81 {offsets = [0, 0], sizes = [8, 32], strides = [1, 1]} : vector<8x128xf32> to vector<8x32xf32>
    %83 = arith.negf %82 : vector<8x32xf32>
    %84 = math.exp %83 : vector<8x32xf32>
    %cst_27 = arith.constant 1.000000e+00 : f32
    %85 = vector.broadcast %cst_27 : f32 to vector<8x32xf32>
    %86 = arith.addf %85, %84 : vector<8x32xf32>
    %87 = arith.divf %85, %86 : vector<8x32xf32>
    %88 = vector.extract_strided_slice %81 {offsets = [0, 32], sizes = [8, 32], strides = [1, 1]} : vector<8x128xf32> to vector<8x32xf32>
    %89 = arith.negf %88 : vector<8x32xf32>
    %90 = math.exp %89 : vector<8x32xf32>
    %cst_28 = arith.constant 1.000000e+00 : f32
    %91 = vector.broadcast %cst_28 : f32 to vector<8x32xf32>
    %92 = arith.addf %91, %90 : vector<8x32xf32>
    %93 = arith.divf %91, %92 : vector<8x32xf32>
    %94 = vector.extract_strided_slice %81 {offsets = [0, 64], sizes = [8, 32], strides = [1, 1]} : vector<8x128xf32> to vector<8x32xf32>
    %95 = math.tanh %94 : vector<8x32xf32>
    %96 = vector.extract_strided_slice %81 {offsets = [0, 96], sizes = [8, 32], strides = [1, 1]} : vector<8x128xf32> to vector<8x32xf32>
    %97 = arith.negf %96 : vector<8x32xf32>
    %98 = math.exp %97 : vector<8x32xf32>
    %cst_29 = arith.constant 1.000000e+00 : f32
    %99 = vector.broadcast %cst_29 : f32 to vector<8x32xf32>
    %100 = arith.addf %99, %98 : vector<8x32xf32>
    %101 = arith.divf %99, %100 : vector<8x32xf32>
    %102 = arith.mulf %93, %71 : vector<8x32xf32>
    %103 = arith.mulf %87, %95 : vector<8x32xf32>
    %104 = arith.addf %102, %103 : vector<8x32xf32>
    %105 = math.tanh %104 : vector<8x32xf32>
    %106 = arith.mulf %101, %105 : vector<8x32xf32>
    %107 = arith.index_cast %77 : i32 to index
    %c0_30 = arith.constant 0 : index
    %108 = vector.load %arg11[%107, %c0_30] : memref<64x32xf32, #tpu.memory_space<vmem>>, vector<8x32xf32>
    tpu.vector_store %arg11[%107, %c0_30], %106 {strides = array<i32>} : memref<64x32xf32, #tpu.memory_space<vmem>>, vector<8x32xf32>,
    %c3_i32 = arith.constant 3 : i32
    %c8_i32_31 = arith.constant 8 : i32
    %109 = arith.muli %c3_i32, %c8_i32_31 : i32
    %110 = tpu.assume_multiple %109, 8 : i32
    %111 = arith.index_cast %110 : i32 to index
    %c0_32 = arith.constant 0 : index
    %112 = vector.load %arg10[%111, %c0_32] : memref<64x128xf32, #tpu.memory_space<vmem>>, vector<8x128xf32>
    %cst_33 = arith.constant dense<0.000000e+00> : vector<8x128xf32>
    %113 = tpu.matmul %106, %7, %cst_33 {dimension_numbers = #tpu.dot_dimension_numbers<[1], [0], [0], [1], [0, 0, 1, 1], [], []>} : vector<8x32xf32>, vector<32x128xf32>, vector<8x128xf32> -> vector<8x128xf32>
    %114 = arith.addf %112, %113 : vector<8x128xf32>
    %115 = vector.extract_strided_slice %114 {offsets = [0, 0], sizes = [8, 32], strides = [1, 1]} : vector<8x128xf32> to vector<8x32xf32>
    %116 = arith.negf %115 : vector<8x32xf32>
    %117 = math.exp %116 : vector<8x32xf32>
    %cst_34 = arith.constant 1.000000e+00 : f32
    %118 = vector.broadcast %cst_34 : f32 to vector<8x32xf32>
    %119 = arith.addf %118, %117 : vector<8x32xf32>
    %120 = arith.divf %118, %119 : vector<8x32xf32>
    %121 = vector.extract_strided_slice %114 {offsets = [0, 32], sizes = [8, 32], strides = [1, 1]} : vector<8x128xf32> to vector<8x32xf32>
    %122 = arith.negf %121 : vector<8x32xf32>
    %123 = math.exp %122 : vector<8x32xf32>
    %cst_35 = arith.constant 1.000000e+00 : f32
    %124 = vector.broadcast %cst_35 : f32 to vector<8x32xf32>
    %125 = arith.addf %124, %123 : vector<8x32xf32>
    %126 = arith.divf %124, %125 : vector<8x32xf32>
    %127 = vector.extract_strided_slice %114 {offsets = [0, 64], sizes = [8, 32], strides = [1, 1]} : vector<8x128xf32> to vector<8x32xf32>
    %128 = math.tanh %127 : vector<8x32xf32>
    %129 = vector.extract_strided_slice %114 {offsets = [0, 96], sizes = [8, 32], strides = [1, 1]} : vector<8x128xf32> to vector<8x32xf32>
    %130 = arith.negf %129 : vector<8x32xf32>
    %131 = math.exp %130 : vector<8x32xf32>
    %cst_36 = arith.constant 1.000000e+00 : f32
    %132 = vector.broadcast %cst_36 : f32 to vector<8x32xf32>
    %133 = arith.addf %132, %131 : vector<8x32xf32>
    %134 = arith.divf %132, %133 : vector<8x32xf32>
    %135 = arith.mulf %126, %104 : vector<8x32xf32>
    %136 = arith.mulf %120, %128 : vector<8x32xf32>
    %137 = arith.addf %135, %136 : vector<8x32xf32>
    %138 = math.tanh %137 : vector<8x32xf32>
    %139 = arith.mulf %134, %138 : vector<8x32xf32>
    %140 = arith.index_cast %110 : i32 to index
    %c0_37 = arith.constant 0 : index
    %141 = vector.load %arg11[%140, %c0_37] : memref<64x32xf32, #tpu.memory_space<vmem>>, vector<8x32xf32>
    tpu.vector_store %arg11[%140, %c0_37], %139 {strides = array<i32>} : memref<64x32xf32, #tpu.memory_space<vmem>>, vector<8x32xf32>,
    %c4_i32 = arith.constant 4 : i32
    %c8_i32_38 = arith.constant 8 : i32
    %142 = arith.muli %c4_i32, %c8_i32_38 : i32
    %143 = tpu.assume_multiple %142, 8 : i32
    %144 = arith.index_cast %143 : i32 to index
    %c0_39 = arith.constant 0 : index
    %145 = vector.load %arg10[%144, %c0_39] : memref<64x128xf32, #tpu.memory_space<vmem>>, vector<8x128xf32>
    %cst_40 = arith.constant dense<0.000000e+00> : vector<8x128xf32>
    %146 = tpu.matmul %139, %7, %cst_40 {dimension_numbers = #tpu.dot_dimension_numbers<[1], [0], [0], [1], [0, 0, 1, 1], [], []>} : vector<8x32xf32>, vector<32x128xf32>, vector<8x128xf32> -> vector<8x128xf32>
    %147 = arith.addf %145, %146 : vector<8x128xf32>
    %148 = vector.extract_strided_slice %147 {offsets = [0, 0], sizes = [8, 32], strides = [1, 1]} : vector<8x128xf32> to vector<8x32xf32>
    %149 = arith.negf %148 : vector<8x32xf32>
    %150 = math.exp %149 : vector<8x32xf32>
    %cst_41 = arith.constant 1.000000e+00 : f32
    %151 = vector.broadcast %cst_41 : f32 to vector<8x32xf32>
    %152 = arith.addf %151, %150 : vector<8x32xf32>
    %153 = arith.divf %151, %152 : vector<8x32xf32>
    %154 = vector.extract_strided_slice %147 {offsets = [0, 32], sizes = [8, 32], strides = [1, 1]} : vector<8x128xf32> to vector<8x32xf32>
    %155 = arith.negf %154 : vector<8x32xf32>
    %156 = math.exp %155 : vector<8x32xf32>
    %cst_42 = arith.constant 1.000000e+00 : f32
    %157 = vector.broadcast %cst_42 : f32 to vector<8x32xf32>
    %158 = arith.addf %157, %156 : vector<8x32xf32>
    %159 = arith.divf %157, %158 : vector<8x32xf32>
    %160 = vector.extract_strided_slice %147 {offsets = [0, 64], sizes = [8, 32], strides = [1, 1]} : vector<8x128xf32> to vector<8x32xf32>
    %161 = math.tanh %160 : vector<8x32xf32>
    %162 = vector.extract_strided_slice %147 {offsets = [0, 96], sizes = [8, 32], strides = [1, 1]} : vector<8x128xf32> to vector<8x32xf32>
    %163 = arith.negf %162 : vector<8x32xf32>
    %164 = math.exp %163 : vector<8x32xf32>
    %cst_43 = arith.constant 1.000000e+00 : f32
    %165 = vector.broadcast %cst_43 : f32 to vector<8x32xf32>
    %166 = arith.addf %165, %164 : vector<8x32xf32>
    %167 = arith.divf %165, %166 : vector<8x32xf32>
    %168 = arith.mulf %159, %137 : vector<8x32xf32>
    %169 = arith.mulf %153, %161 : vector<8x32xf32>
    %170 = arith.addf %168, %169 : vector<8x32xf32>
    %171 = math.tanh %170 : vector<8x32xf32>
    %172 = arith.mulf %167, %171 : vector<8x32xf32>
    %173 = arith.index_cast %143 : i32 to index
    %c0_44 = arith.constant 0 : index
    %174 = vector.load %arg11[%173, %c0_44] : memref<64x32xf32, #tpu.memory_space<vmem>>, vector<8x32xf32>
    tpu.vector_store %arg11[%173, %c0_44], %172 {strides = array<i32>} : memref<64x32xf32, #tpu.memory_space<vmem>>, vector<8x32xf32>,
    %c5_i32 = arith.constant 5 : i32
    %c8_i32_45 = arith.constant 8 : i32
    %175 = arith.muli %c5_i32, %c8_i32_45 : i32
    %176 = tpu.assume_multiple %175, 8 : i32
    %177 = arith.index_cast %176 : i32 to index
    %c0_46 = arith.constant 0 : index
    %178 = vector.load %arg10[%177, %c0_46] : memref<64x128xf32, #tpu.memory_space<vmem>>, vector<8x128xf32>
    %cst_47 = arith.constant dense<0.000000e+00> : vector<8x128xf32>
    %179 = tpu.matmul %172, %7, %cst_47 {dimension_numbers = #tpu.dot_dimension_numbers<[1], [0], [0], [1], [0, 0, 1, 1], [], []>} : vector<8x32xf32>, vector<32x128xf32>, vector<8x128xf32> -> vector<8x128xf32>
    %180 = arith.addf %178, %179 : vector<8x128xf32>
    %181 = vector.extract_strided_slice %180 {offsets = [0, 0], sizes = [8, 32], strides = [1, 1]} : vector<8x128xf32> to vector<8x32xf32>
    %182 = arith.negf %181 : vector<8x32xf32>
    %183 = math.exp %182 : vector<8x32xf32>
    %cst_48 = arith.constant 1.000000e+00 : f32
    %184 = vector.broadcast %cst_48 : f32 to vector<8x32xf32>
    %185 = arith.addf %184, %183 : vector<8x32xf32>
    %186 = arith.divf %184, %185 : vector<8x32xf32>
    %187 = vector.extract_strided_slice %180 {offsets = [0, 32], sizes = [8, 32], strides = [1, 1]} : vector<8x128xf32> to vector<8x32xf32>
    %188 = arith.negf %187 : vector<8x32xf32>
    %189 = math.exp %188 : vector<8x32xf32>
    %cst_49 = arith.constant 1.000000e+00 : f32
    %190 = vector.broadcast %cst_49 : f32 to vector<8x32xf32>
    %191 = arith.addf %190, %189 : vector<8x32xf32>
    %192 = arith.divf %190, %191 : vector<8x32xf32>
    %193 = vector.extract_strided_slice %180 {offsets = [0, 64], sizes = [8, 32], strides = [1, 1]} : vector<8x128xf32> to vector<8x32xf32>
    %194 = math.tanh %193 : vector<8x32xf32>
    %195 = vector.extract_strided_slice %180 {offsets = [0, 96], sizes = [8, 32], strides = [1, 1]} : vector<8x128xf32> to vector<8x32xf32>
    %196 = arith.negf %195 : vector<8x32xf32>
    %197 = math.exp %196 : vector<8x32xf32>
    %cst_50 = arith.constant 1.000000e+00 : f32
    %198 = vector.broadcast %cst_50 : f32 to vector<8x32xf32>
    %199 = arith.addf %198, %197 : vector<8x32xf32>
    %200 = arith.divf %198, %199 : vector<8x32xf32>
    %201 = arith.mulf %192, %170 : vector<8x32xf32>
    %202 = arith.mulf %186, %194 : vector<8x32xf32>
    %203 = arith.addf %201, %202 : vector<8x32xf32>
    %204 = math.tanh %203 : vector<8x32xf32>
    %205 = arith.mulf %200, %204 : vector<8x32xf32>
    %206 = arith.index_cast %176 : i32 to index
    %c0_51 = arith.constant 0 : index
    %207 = vector.load %arg11[%206, %c0_51] : memref<64x32xf32, #tpu.memory_space<vmem>>, vector<8x32xf32>
    tpu.vector_store %arg11[%206, %c0_51], %205 {strides = array<i32>} : memref<64x32xf32, #tpu.memory_space<vmem>>, vector<8x32xf32>,
    %c6_i32 = arith.constant 6 : i32
    %c8_i32_52 = arith.constant 8 : i32
    %208 = arith.muli %c6_i32, %c8_i32_52 : i32
    %209 = tpu.assume_multiple %208, 8 : i32
    %210 = arith.index_cast %209 : i32 to index
    %c0_53 = arith.constant 0 : index
    %211 = vector.load %arg10[%210, %c0_53] : memref<64x128xf32, #tpu.memory_space<vmem>>, vector<8x128xf32>
    %cst_54 = arith.constant dense<0.000000e+00> : vector<8x128xf32>
    %212 = tpu.matmul %205, %7, %cst_54 {dimension_numbers = #tpu.dot_dimension_numbers<[1], [0], [0], [1], [0, 0, 1, 1], [], []>} : vector<8x32xf32>, vector<32x128xf32>, vector<8x128xf32> -> vector<8x128xf32>
    %213 = arith.addf %211, %212 : vector<8x128xf32>
    %214 = vector.extract_strided_slice %213 {offsets = [0, 0], sizes = [8, 32], strides = [1, 1]} : vector<8x128xf32> to vector<8x32xf32>
    %215 = arith.negf %214 : vector<8x32xf32>
    %216 = math.exp %215 : vector<8x32xf32>
    %cst_55 = arith.constant 1.000000e+00 : f32
    %217 = vector.broadcast %cst_55 : f32 to vector<8x32xf32>
    %218 = arith.addf %217, %216 : vector<8x32xf32>
    %219 = arith.divf %217, %218 : vector<8x32xf32>
    %220 = vector.extract_strided_slice %213 {offsets = [0, 32], sizes = [8, 32], strides = [1, 1]} : vector<8x128xf32> to vector<8x32xf32>
    %221 = arith.negf %220 : vector<8x32xf32>
    %222 = math.exp %221 : vector<8x32xf32>
    %cst_56 = arith.constant 1.000000e+00 : f32
    %223 = vector.broadcast %cst_56 : f32 to vector<8x32xf32>
    %224 = arith.addf %223, %222 : vector<8x32xf32>
    %225 = arith.divf %223, %224 : vector<8x32xf32>
    %226 = vector.extract_strided_slice %213 {offsets = [0, 64], sizes = [8, 32], strides = [1, 1]} : vector<8x128xf32> to vector<8x32xf32>
    %227 = math.tanh %226 : vector<8x32xf32>
    %228 = vector.extract_strided_slice %213 {offsets = [0, 96], sizes = [8, 32], strides = [1, 1]} : vector<8x128xf32> to vector<8x32xf32>
    %229 = arith.negf %228 : vector<8x32xf32>
    %230 = math.exp %229 : vector<8x32xf32>
    %cst_57 = arith.constant 1.000000e+00 : f32
    %231 = vector.broadcast %cst_57 : f32 to vector<8x32xf32>
    %232 = arith.addf %231, %230 : vector<8x32xf32>
    %233 = arith.divf %231, %232 : vector<8x32xf32>
    %234 = arith.mulf %225, %203 : vector<8x32xf32>
    %235 = arith.mulf %219, %227 : vector<8x32xf32>
    %236 = arith.addf %234, %235 : vector<8x32xf32>
    %237 = math.tanh %236 : vector<8x32xf32>
    %238 = arith.mulf %233, %237 : vector<8x32xf32>
    %239 = arith.index_cast %209 : i32 to index
    %c0_58 = arith.constant 0 : index
    %240 = vector.load %arg11[%239, %c0_58] : memref<64x32xf32, #tpu.memory_space<vmem>>, vector<8x32xf32>
    tpu.vector_store %arg11[%239, %c0_58], %238 {strides = array<i32>} : memref<64x32xf32, #tpu.memory_space<vmem>>, vector<8x32xf32>,
    %c7_i32 = arith.constant 7 : i32
    %c8_i32_59 = arith.constant 8 : i32
    %241 = arith.muli %c7_i32, %c8_i32_59 : i32
    %242 = tpu.assume_multiple %241, 8 : i32
    %243 = arith.index_cast %242 : i32 to index
    %c0_60 = arith.constant 0 : index
    %244 = vector.load %arg10[%243, %c0_60] : memref<64x128xf32, #tpu.memory_space<vmem>>, vector<8x128xf32>
    %cst_61 = arith.constant dense<0.000000e+00> : vector<8x128xf32>
    %245 = tpu.matmul %238, %7, %cst_61 {dimension_numbers = #tpu.dot_dimension_numbers<[1], [0], [0], [1], [0, 0, 1, 1], [], []>} : vector<8x32xf32>, vector<32x128xf32>, vector<8x128xf32> -> vector<8x128xf32>
    %246 = arith.addf %244, %245 : vector<8x128xf32>
    %247 = vector.extract_strided_slice %246 {offsets = [0, 0], sizes = [8, 32], strides = [1, 1]} : vector<8x128xf32> to vector<8x32xf32>
    %248 = arith.negf %247 : vector<8x32xf32>
    %249 = math.exp %248 : vector<8x32xf32>
    %cst_62 = arith.constant 1.000000e+00 : f32
    %250 = vector.broadcast %cst_62 : f32 to vector<8x32xf32>
    %251 = arith.addf %250, %249 : vector<8x32xf32>
    %252 = arith.divf %250, %251 : vector<8x32xf32>
    %253 = vector.extract_strided_slice %246 {offsets = [0, 32], sizes = [8, 32], strides = [1, 1]} : vector<8x128xf32> to vector<8x32xf32>
    %254 = arith.negf %253 : vector<8x32xf32>
    %255 = math.exp %254 : vector<8x32xf32>
    %cst_63 = arith.constant 1.000000e+00 : f32
    %256 = vector.broadcast %cst_63 : f32 to vector<8x32xf32>
    %257 = arith.addf %256, %255 : vector<8x32xf32>
    %258 = arith.divf %256, %257 : vector<8x32xf32>
    %259 = vector.extract_strided_slice %246 {offsets = [0, 64], sizes = [8, 32], strides = [1, 1]} : vector<8x128xf32> to vector<8x32xf32>
    %260 = math.tanh %259 : vector<8x32xf32>
    %261 = vector.extract_strided_slice %246 {offsets = [0, 96], sizes = [8, 32], strides = [1, 1]} : vector<8x128xf32> to vector<8x32xf32>
    %262 = arith.negf %261 : vector<8x32xf32>
    %263 = math.exp %262 : vector<8x32xf32>
    %cst_64 = arith.constant 1.000000e+00 : f32
    %264 = vector.broadcast %cst_64 : f32 to vector<8x32xf32>
    %265 = arith.addf %264, %263 : vector<8x32xf32>
    %266 = arith.divf %264, %265 : vector<8x32xf32>
    %267 = arith.mulf %258, %236 : vector<8x32xf32>
    %268 = arith.mulf %252, %260 : vector<8x32xf32>
    %269 = arith.addf %267, %268 : vector<8x32xf32>
    %270 = math.tanh %269 : vector<8x32xf32>
    %271 = arith.mulf %266, %270 : vector<8x32xf32>
    %272 = arith.index_cast %242 : i32 to index
    %c0_65 = arith.constant 0 : index
    %273 = vector.load %arg11[%272, %c0_65] : memref<64x32xf32, #tpu.memory_space<vmem>>, vector<8x32xf32>
    tpu.vector_store %arg11[%272, %c0_65], %271 {strides = array<i32>} : memref<64x32xf32, #tpu.memory_space<vmem>>, vector<8x32xf32>,
    %c8_i32_66 = arith.constant 8 : i32
    %c0_67 = arith.constant 0 : index
    %c0_68 = arith.constant 0 : index
    %274 = vector.load %arg11[%c0_67, %c0_68] : memref<64x32xf32, #tpu.memory_space<vmem>>, vector<64x32xf32>
    %c0_69 = arith.constant 0 : index
    %c0_70 = arith.constant 0 : index
    %275 = vector.load %arg4[%c0_69, %c0_70] : memref<32x128xf32, #tpu.memory_space<vmem>>, vector<32x128xf32>
    %cst_71 = arith.constant dense<0.000000e+00> : vector<64x128xf32>
    %276 = tpu.matmul %274, %275, %cst_71 {dimension_numbers = #tpu.dot_dimension_numbers<[1], [0], [0], [1], [0, 0, 1, 1], [], []>} : vector<64x32xf32>, vector<32x128xf32>, vector<64x128xf32> -> vector<64x128xf32>
    %c0_72 = arith.constant 0 : index
    %c0_73 = arith.constant 0 : index
    %277 = vector.load %arg6[%c0_72, %c0_73] : memref<1x128xf32, #tpu.memory_space<vmem>>, vector<1x128xf32>
    %278 = vector.broadcast %277 : vector<1x128xf32> to vector<64x128xf32>
    %279 = arith.addf %276, %278 : vector<64x128xf32>
    %c0_74 = arith.constant 0 : index
    %c0_75 = arith.constant 0 : index
    %280 = vector.load %arg10[%c0_74, %c0_75] : memref<64x128xf32, #tpu.memory_space<vmem>>, vector<64x128xf32>
    tpu.vector_store %arg10[%c0_74, %c0_75], %279 {strides = array<i32>} : memref<64x128xf32, #tpu.memory_space<vmem>>, vector<64x128xf32>,
    %c0_76 = arith.constant 0 : index
    %c0_77 = arith.constant 0 : index
    %281 = vector.load %arg5[%c0_76, %c0_77] : memref<32x128xf32, #tpu.memory_space<vmem>>, vector<32x128xf32>
    %cst_78 = arith.constant 0.000000e+00 : f32
    %282 = vector.broadcast %cst_78 : f32 to vector<8x32xf32>
    %cst_79 = arith.constant 0.000000e+00 : f32
    %283 = vector.broadcast %cst_79 : f32 to vector<8x32xf32>
    %c0_i32_80 = arith.constant 0 : i32
    %c8_i32_81 = arith.constant 8 : i32
    %284 = arith.muli %c0_i32_80, %c8_i32_81 : i32
    %285 = tpu.assume_multiple %284, 8 : i32
    %286 = arith.index_cast %285 : i32 to index
    %c0_82 = arith.constant 0 : index
    %287 = vector.load %arg10[%286, %c0_82] : memref<64x128xf32, #tpu.memory_space<vmem>>, vector<8x128xf32>
    %cst_83 = arith.constant dense<0.000000e+00> : vector<8x128xf32>
    %288 = tpu.matmul %282, %281, %cst_83 {dimension_numbers = #tpu.dot_dimension_numbers<[1], [0], [0], [1], [0, 0, 1, 1], [], []>} : vector<8x32xf32>, vector<32x128xf32>, vector<8x128xf32> -> vector<8x128xf32>
    %289 = arith.addf %287, %288 : vector<8x128xf32>
    %290 = vector.extract_strided_slice %289 {offsets = [0, 0], sizes = [8, 32], strides = [1, 1]} : vector<8x128xf32> to vector<8x32xf32>
    %291 = arith.negf %290 : vector<8x32xf32>
    %292 = math.exp %291 : vector<8x32xf32>
    %cst_84 = arith.constant 1.000000e+00 : f32
    %293 = vector.broadcast %cst_84 : f32 to vector<8x32xf32>
    %294 = arith.addf %293, %292 : vector<8x32xf32>
    %295 = arith.divf %293, %294 : vector<8x32xf32>
    %296 = vector.extract_strided_slice %289 {offsets = [0, 32], sizes = [8, 32], strides = [1, 1]} : vector<8x128xf32> to vector<8x32xf32>
    %297 = arith.negf %296 : vector<8x32xf32>
    %298 = math.exp %297 : vector<8x32xf32>
    %cst_85 = arith.constant 1.000000e+00 : f32
    %299 = vector.broadcast %cst_85 : f32 to vector<8x32xf32>
    %300 = arith.addf %299, %298 : vector<8x32xf32>
    %301 = arith.divf %299, %300 : vector<8x32xf32>
    %302 = vector.extract_strided_slice %289 {offsets = [0, 64], sizes = [8, 32], strides = [1, 1]} : vector<8x128xf32> to vector<8x32xf32>
    %303 = math.tanh %302 : vector<8x32xf32>
    %304 = vector.extract_strided_slice %289 {offsets = [0, 96], sizes = [8, 32], strides = [1, 1]} : vector<8x128xf32> to vector<8x32xf32>
    %305 = arith.negf %304 : vector<8x32xf32>
    %306 = math.exp %305 : vector<8x32xf32>
    %cst_86 = arith.constant 1.000000e+00 : f32
    %307 = vector.broadcast %cst_86 : f32 to vector<8x32xf32>
    %308 = arith.addf %307, %306 : vector<8x32xf32>
    %309 = arith.divf %307, %308 : vector<8x32xf32>
    %310 = arith.mulf %301, %283 : vector<8x32xf32>
    %311 = arith.mulf %295, %303 : vector<8x32xf32>
    %312 = arith.addf %310, %311 : vector<8x32xf32>
    %313 = math.tanh %312 : vector<8x32xf32>
    %314 = arith.mulf %309, %313 : vector<8x32xf32>
    %315 = arith.index_cast %285 : i32 to index
    %c0_87 = arith.constant 0 : index
    %316 = vector.load %arg11[%315, %c0_87] : memref<64x32xf32, #tpu.memory_space<vmem>>, vector<8x32xf32>
    tpu.vector_store %arg11[%315, %c0_87], %314 {strides = array<i32>} : memref<64x32xf32, #tpu.memory_space<vmem>>, vector<8x32xf32>,
    %c1_i32_88 = arith.constant 1 : i32
    %c8_i32_89 = arith.constant 8 : i32
    %317 = arith.muli %c1_i32_88, %c8_i32_89 : i32
    %318 = tpu.assume_multiple %317, 8 : i32
    %319 = arith.index_cast %318 : i32 to index
    %c0_90 = arith.constant 0 : index
    %320 = vector.load %arg10[%319, %c0_90] : memref<64x128xf32, #tpu.memory_space<vmem>>, vector<8x128xf32>
    %cst_91 = arith.constant dense<0.000000e+00> : vector<8x128xf32>
    %321 = tpu.matmul %314, %281, %cst_91 {dimension_numbers = #tpu.dot_dimension_numbers<[1], [0], [0], [1], [0, 0, 1, 1], [], []>} : vector<8x32xf32>, vector<32x128xf32>, vector<8x128xf32> -> vector<8x128xf32>
    %322 = arith.addf %320, %321 : vector<8x128xf32>
    %323 = vector.extract_strided_slice %322 {offsets = [0, 0], sizes = [8, 32], strides = [1, 1]} : vector<8x128xf32> to vector<8x32xf32>
    %324 = arith.negf %323 : vector<8x32xf32>
    %325 = math.exp %324 : vector<8x32xf32>
    %cst_92 = arith.constant 1.000000e+00 : f32
    %326 = vector.broadcast %cst_92 : f32 to vector<8x32xf32>
    %327 = arith.addf %326, %325 : vector<8x32xf32>
    %328 = arith.divf %326, %327 : vector<8x32xf32>
    %329 = vector.extract_strided_slice %322 {offsets = [0, 32], sizes = [8, 32], strides = [1, 1]} : vector<8x128xf32> to vector<8x32xf32>
    %330 = arith.negf %329 : vector<8x32xf32>
    %331 = math.exp %330 : vector<8x32xf32>
    %cst_93 = arith.constant 1.000000e+00 : f32
    %332 = vector.broadcast %cst_93 : f32 to vector<8x32xf32>
    %333 = arith.addf %332, %331 : vector<8x32xf32>
    %334 = arith.divf %332, %333 : vector<8x32xf32>
    %335 = vector.extract_strided_slice %322 {offsets = [0, 64], sizes = [8, 32], strides = [1, 1]} : vector<8x128xf32> to vector<8x32xf32>
    %336 = math.tanh %335 : vector<8x32xf32>
    %337 = vector.extract_strided_slice %322 {offsets = [0, 96], sizes = [8, 32], strides = [1, 1]} : vector<8x128xf32> to vector<8x32xf32>
    %338 = arith.negf %337 : vector<8x32xf32>
    %339 = math.exp %338 : vector<8x32xf32>
    %cst_94 = arith.constant 1.000000e+00 : f32
    %340 = vector.broadcast %cst_94 : f32 to vector<8x32xf32>
    %341 = arith.addf %340, %339 : vector<8x32xf32>
    %342 = arith.divf %340, %341 : vector<8x32xf32>
    %343 = arith.mulf %334, %312 : vector<8x32xf32>
    %344 = arith.mulf %328, %336 : vector<8x32xf32>
    %345 = arith.addf %343, %344 : vector<8x32xf32>
    %346 = math.tanh %345 : vector<8x32xf32>
    %347 = arith.mulf %342, %346 : vector<8x32xf32>
    %348 = arith.index_cast %318 : i32 to index
    %c0_95 = arith.constant 0 : index
    %349 = vector.load %arg11[%348, %c0_95] : memref<64x32xf32, #tpu.memory_space<vmem>>, vector<8x32xf32>
    tpu.vector_store %arg11[%348, %c0_95], %347 {strides = array<i32>} : memref<64x32xf32, #tpu.memory_space<vmem>>, vector<8x32xf32>,
    %c2_i32_96 = arith.constant 2 : i32
    %c8_i32_97 = arith.constant 8 : i32
    %350 = arith.muli %c2_i32_96, %c8_i32_97 : i32
    %351 = tpu.assume_multiple %350, 8 : i32
    %352 = arith.index_cast %351 : i32 to index
    %c0_98 = arith.constant 0 : index
    %353 = vector.load %arg10[%352, %c0_98] : memref<64x128xf32, #tpu.memory_space<vmem>>, vector<8x128xf32>
    %cst_99 = arith.constant dense<0.000000e+00> : vector<8x128xf32>
    %354 = tpu.matmul %347, %281, %cst_99 {dimension_numbers = #tpu.dot_dimension_numbers<[1], [0], [0], [1], [0, 0, 1, 1], [], []>} : vector<8x32xf32>, vector<32x128xf32>, vector<8x128xf32> -> vector<8x128xf32>
    %355 = arith.addf %353, %354 : vector<8x128xf32>
    %356 = vector.extract_strided_slice %355 {offsets = [0, 0], sizes = [8, 32], strides = [1, 1]} : vector<8x128xf32> to vector<8x32xf32>
    %357 = arith.negf %356 : vector<8x32xf32>
    %358 = math.exp %357 : vector<8x32xf32>
    %cst_100 = arith.constant 1.000000e+00 : f32
    %359 = vector.broadcast %cst_100 : f32 to vector<8x32xf32>
    %360 = arith.addf %359, %358 : vector<8x32xf32>
    %361 = arith.divf %359, %360 : vector<8x32xf32>
    %362 = vector.extract_strided_slice %355 {offsets = [0, 32], sizes = [8, 32], strides = [1, 1]} : vector<8x128xf32> to vector<8x32xf32>
    %363 = arith.negf %362 : vector<8x32xf32>
    %364 = math.exp %363 : vector<8x32xf32>
    %cst_101 = arith.constant 1.000000e+00 : f32
    %365 = vector.broadcast %cst_101 : f32 to vector<8x32xf32>
    %366 = arith.addf %365, %364 : vector<8x32xf32>
    %367 = arith.divf %365, %366 : vector<8x32xf32>
    %368 = vector.extract_strided_slice %355 {offsets = [0, 64], sizes = [8, 32], strides = [1, 1]} : vector<8x128xf32> to vector<8x32xf32>
    %369 = math.tanh %368 : vector<8x32xf32>
    %370 = vector.extract_strided_slice %355 {offsets = [0, 96], sizes = [8, 32], strides = [1, 1]} : vector<8x128xf32> to vector<8x32xf32>
    %371 = arith.negf %370 : vector<8x32xf32>
    %372 = math.exp %371 : vector<8x32xf32>
    %cst_102 = arith.constant 1.000000e+00 : f32
    %373 = vector.broadcast %cst_102 : f32 to vector<8x32xf32>
    %374 = arith.addf %373, %372 : vector<8x32xf32>
    %375 = arith.divf %373, %374 : vector<8x32xf32>
    %376 = arith.mulf %367, %345 : vector<8x32xf32>
    %377 = arith.mulf %361, %369 : vector<8x32xf32>
    %378 = arith.addf %376, %377 : vector<8x32xf32>
    %379 = math.tanh %378 : vector<8x32xf32>
    %380 = arith.mulf %375, %379 : vector<8x32xf32>
    %381 = arith.index_cast %351 : i32 to index
    %c0_103 = arith.constant 0 : index
    %382 = vector.load %arg11[%381, %c0_103] : memref<64x32xf32, #tpu.memory_space<vmem>>, vector<8x32xf32>
    tpu.vector_store %arg11[%381, %c0_103], %380 {strides = array<i32>} : memref<64x32xf32, #tpu.memory_space<vmem>>, vector<8x32xf32>,
    %c3_i32_104 = arith.constant 3 : i32
    %c8_i32_105 = arith.constant 8 : i32
    %383 = arith.muli %c3_i32_104, %c8_i32_105 : i32
    %384 = tpu.assume_multiple %383, 8 : i32
    %385 = arith.index_cast %384 : i32 to index
    %c0_106 = arith.constant 0 : index
    %386 = vector.load %arg10[%385, %c0_106] : memref<64x128xf32, #tpu.memory_space<vmem>>, vector<8x128xf32>
    %cst_107 = arith.constant dense<0.000000e+00> : vector<8x128xf32>
    %387 = tpu.matmul %380, %281, %cst_107 {dimension_numbers = #tpu.dot_dimension_numbers<[1], [0], [0], [1], [0, 0, 1, 1], [], []>} : vector<8x32xf32>, vector<32x128xf32>, vector<8x128xf32> -> vector<8x128xf32>
    %388 = arith.addf %386, %387 : vector<8x128xf32>
    %389 = vector.extract_strided_slice %388 {offsets = [0, 0], sizes = [8, 32], strides = [1, 1]} : vector<8x128xf32> to vector<8x32xf32>
    %390 = arith.negf %389 : vector<8x32xf32>
    %391 = math.exp %390 : vector<8x32xf32>
    %cst_108 = arith.constant 1.000000e+00 : f32
    %392 = vector.broadcast %cst_108 : f32 to vector<8x32xf32>
    %393 = arith.addf %392, %391 : vector<8x32xf32>
    %394 = arith.divf %392, %393 : vector<8x32xf32>
    %395 = vector.extract_strided_slice %388 {offsets = [0, 32], sizes = [8, 32], strides = [1, 1]} : vector<8x128xf32> to vector<8x32xf32>
    %396 = arith.negf %395 : vector<8x32xf32>
    %397 = math.exp %396 : vector<8x32xf32>
    %cst_109 = arith.constant 1.000000e+00 : f32
    %398 = vector.broadcast %cst_109 : f32 to vector<8x32xf32>
    %399 = arith.addf %398, %397 : vector<8x32xf32>
    %400 = arith.divf %398, %399 : vector<8x32xf32>
    %401 = vector.extract_strided_slice %388 {offsets = [0, 64], sizes = [8, 32], strides = [1, 1]} : vector<8x128xf32> to vector<8x32xf32>
    %402 = math.tanh %401 : vector<8x32xf32>
    %403 = vector.extract_strided_slice %388 {offsets = [0, 96], sizes = [8, 32], strides = [1, 1]} : vector<8x128xf32> to vector<8x32xf32>
    %404 = arith.negf %403 : vector<8x32xf32>
    %405 = math.exp %404 : vector<8x32xf32>
    %cst_110 = arith.constant 1.000000e+00 : f32
    %406 = vector.broadcast %cst_110 : f32 to vector<8x32xf32>
    %407 = arith.addf %406, %405 : vector<8x32xf32>
    %408 = arith.divf %406, %407 : vector<8x32xf32>
    %409 = arith.mulf %400, %378 : vector<8x32xf32>
    %410 = arith.mulf %394, %402 : vector<8x32xf32>
    %411 = arith.addf %409, %410 : vector<8x32xf32>
    %412 = math.tanh %411 : vector<8x32xf32>
    %413 = arith.mulf %408, %412 : vector<8x32xf32>
    %414 = arith.index_cast %384 : i32 to index
    %c0_111 = arith.constant 0 : index
    %415 = vector.load %arg11[%414, %c0_111] : memref<64x32xf32, #tpu.memory_space<vmem>>, vector<8x32xf32>
    tpu.vector_store %arg11[%414, %c0_111], %413 {strides = array<i32>} : memref<64x32xf32, #tpu.memory_space<vmem>>, vector<8x32xf32>,
    %c4_i32_112 = arith.constant 4 : i32
    %c8_i32_113 = arith.constant 8 : i32
    %416 = arith.muli %c4_i32_112, %c8_i32_113 : i32
    %417 = tpu.assume_multiple %416, 8 : i32
    %418 = arith.index_cast %417 : i32 to index
    %c0_114 = arith.constant 0 : index
    %419 = vector.load %arg10[%418, %c0_114] : memref<64x128xf32, #tpu.memory_space<vmem>>, vector<8x128xf32>
    %cst_115 = arith.constant dense<0.000000e+00> : vector<8x128xf32>
    %420 = tpu.matmul %413, %281, %cst_115 {dimension_numbers = #tpu.dot_dimension_numbers<[1], [0], [0], [1], [0, 0, 1, 1], [], []>} : vector<8x32xf32>, vector<32x128xf32>, vector<8x128xf32> -> vector<8x128xf32>
    %421 = arith.addf %419, %420 : vector<8x128xf32>
    %422 = vector.extract_strided_slice %421 {offsets = [0, 0], sizes = [8, 32], strides = [1, 1]} : vector<8x128xf32> to vector<8x32xf32>
    %423 = arith.negf %422 : vector<8x32xf32>
    %424 = math.exp %423 : vector<8x32xf32>
    %cst_116 = arith.constant 1.000000e+00 : f32
    %425 = vector.broadcast %cst_116 : f32 to vector<8x32xf32>
    %426 = arith.addf %425, %424 : vector<8x32xf32>
    %427 = arith.divf %425, %426 : vector<8x32xf32>
    %428 = vector.extract_strided_slice %421 {offsets = [0, 32], sizes = [8, 32], strides = [1, 1]} : vector<8x128xf32> to vector<8x32xf32>
    %429 = arith.negf %428 : vector<8x32xf32>
    %430 = math.exp %429 : vector<8x32xf32>
    %cst_117 = arith.constant 1.000000e+00 : f32
    %431 = vector.broadcast %cst_117 : f32 to vector<8x32xf32>
    %432 = arith.addf %431, %430 : vector<8x32xf32>
    %433 = arith.divf %431, %432 : vector<8x32xf32>
    %434 = vector.extract_strided_slice %421 {offsets = [0, 64], sizes = [8, 32], strides = [1, 1]} : vector<8x128xf32> to vector<8x32xf32>
    %435 = math.tanh %434 : vector<8x32xf32>
    %436 = vector.extract_strided_slice %421 {offsets = [0, 96], sizes = [8, 32], strides = [1, 1]} : vector<8x128xf32> to vector<8x32xf32>
    %437 = arith.negf %436 : vector<8x32xf32>
    %438 = math.exp %437 : vector<8x32xf32>
    %cst_118 = arith.constant 1.000000e+00 : f32
    %439 = vector.broadcast %cst_118 : f32 to vector<8x32xf32>
    %440 = arith.addf %439, %438 : vector<8x32xf32>
    %441 = arith.divf %439, %440 : vector<8x32xf32>
    %442 = arith.mulf %433, %411 : vector<8x32xf32>
    %443 = arith.mulf %427, %435 : vector<8x32xf32>
    %444 = arith.addf %442, %443 : vector<8x32xf32>
    %445 = math.tanh %444 : vector<8x32xf32>
    %446 = arith.mulf %441, %445 : vector<8x32xf32>
    %447 = arith.index_cast %417 : i32 to index
    %c0_119 = arith.constant 0 : index
    %448 = vector.load %arg11[%447, %c0_119] : memref<64x32xf32, #tpu.memory_space<vmem>>, vector<8x32xf32>
    tpu.vector_store %arg11[%447, %c0_119], %446 {strides = array<i32>} : memref<64x32xf32, #tpu.memory_space<vmem>>, vector<8x32xf32>,
    %c5_i32_120 = arith.constant 5 : i32
    %c8_i32_121 = arith.constant 8 : i32
    %449 = arith.muli %c5_i32_120, %c8_i32_121 : i32
    %450 = tpu.assume_multiple %449, 8 : i32
    %451 = arith.index_cast %450 : i32 to index
    %c0_122 = arith.constant 0 : index
    %452 = vector.load %arg10[%451, %c0_122] : memref<64x128xf32, #tpu.memory_space<vmem>>, vector<8x128xf32>
    %cst_123 = arith.constant dense<0.000000e+00> : vector<8x128xf32>
    %453 = tpu.matmul %446, %281, %cst_123 {dimension_numbers = #tpu.dot_dimension_numbers<[1], [0], [0], [1], [0, 0, 1, 1], [], []>} : vector<8x32xf32>, vector<32x128xf32>, vector<8x128xf32> -> vector<8x128xf32>
    %454 = arith.addf %452, %453 : vector<8x128xf32>
    %455 = vector.extract_strided_slice %454 {offsets = [0, 0], sizes = [8, 32], strides = [1, 1]} : vector<8x128xf32> to vector<8x32xf32>
    %456 = arith.negf %455 : vector<8x32xf32>
    %457 = math.exp %456 : vector<8x32xf32>
    %cst_124 = arith.constant 1.000000e+00 : f32
    %458 = vector.broadcast %cst_124 : f32 to vector<8x32xf32>
    %459 = arith.addf %458, %457 : vector<8x32xf32>
    %460 = arith.divf %458, %459 : vector<8x32xf32>
    %461 = vector.extract_strided_slice %454 {offsets = [0, 32], sizes = [8, 32], strides = [1, 1]} : vector<8x128xf32> to vector<8x32xf32>
    %462 = arith.negf %461 : vector<8x32xf32>
    %463 = math.exp %462 : vector<8x32xf32>
    %cst_125 = arith.constant 1.000000e+00 : f32
    %464 = vector.broadcast %cst_125 : f32 to vector<8x32xf32>
    %465 = arith.addf %464, %463 : vector<8x32xf32>
    %466 = arith.divf %464, %465 : vector<8x32xf32>
    %467 = vector.extract_strided_slice %454 {offsets = [0, 64], sizes = [8, 32], strides = [1, 1]} : vector<8x128xf32> to vector<8x32xf32>
    %468 = math.tanh %467 : vector<8x32xf32>
    %469 = vector.extract_strided_slice %454 {offsets = [0, 96], sizes = [8, 32], strides = [1, 1]} : vector<8x128xf32> to vector<8x32xf32>
    %470 = arith.negf %469 : vector<8x32xf32>
    %471 = math.exp %470 : vector<8x32xf32>
    %cst_126 = arith.constant 1.000000e+00 : f32
    %472 = vector.broadcast %cst_126 : f32 to vector<8x32xf32>
    %473 = arith.addf %472, %471 : vector<8x32xf32>
    %474 = arith.divf %472, %473 : vector<8x32xf32>
    %475 = arith.mulf %466, %444 : vector<8x32xf32>
    %476 = arith.mulf %460, %468 : vector<8x32xf32>
    %477 = arith.addf %475, %476 : vector<8x32xf32>
    %478 = math.tanh %477 : vector<8x32xf32>
    %479 = arith.mulf %474, %478 : vector<8x32xf32>
    %480 = arith.index_cast %450 : i32 to index
    %c0_127 = arith.constant 0 : index
    %481 = vector.load %arg11[%480, %c0_127] : memref<64x32xf32, #tpu.memory_space<vmem>>, vector<8x32xf32>
    tpu.vector_store %arg11[%480, %c0_127], %479 {strides = array<i32>} : memref<64x32xf32, #tpu.memory_space<vmem>>, vector<8x32xf32>,
    %c6_i32_128 = arith.constant 6 : i32
    %c8_i32_129 = arith.constant 8 : i32
    %482 = arith.muli %c6_i32_128, %c8_i32_129 : i32
    %483 = tpu.assume_multiple %482, 8 : i32
    %484 = arith.index_cast %483 : i32 to index
    %c0_130 = arith.constant 0 : index
    %485 = vector.load %arg10[%484, %c0_130] : memref<64x128xf32, #tpu.memory_space<vmem>>, vector<8x128xf32>
    %cst_131 = arith.constant dense<0.000000e+00> : vector<8x128xf32>
    %486 = tpu.matmul %479, %281, %cst_131 {dimension_numbers = #tpu.dot_dimension_numbers<[1], [0], [0], [1], [0, 0, 1, 1], [], []>} : vector<8x32xf32>, vector<32x128xf32>, vector<8x128xf32> -> vector<8x128xf32>
    %487 = arith.addf %485, %486 : vector<8x128xf32>
    %488 = vector.extract_strided_slice %487 {offsets = [0, 0], sizes = [8, 32], strides = [1, 1]} : vector<8x128xf32> to vector<8x32xf32>
    %489 = arith.negf %488 : vector<8x32xf32>
    %490 = math.exp %489 : vector<8x32xf32>
    %cst_132 = arith.constant 1.000000e+00 : f32
    %491 = vector.broadcast %cst_132 : f32 to vector<8x32xf32>
    %492 = arith.addf %491, %490 : vector<8x32xf32>
    %493 = arith.divf %491, %492 : vector<8x32xf32>
    %494 = vector.extract_strided_slice %487 {offsets = [0, 32], sizes = [8, 32], strides = [1, 1]} : vector<8x128xf32> to vector<8x32xf32>
    %495 = arith.negf %494 : vector<8x32xf32>
    %496 = math.exp %495 : vector<8x32xf32>
    %cst_133 = arith.constant 1.000000e+00 : f32
    %497 = vector.broadcast %cst_133 : f32 to vector<8x32xf32>
    %498 = arith.addf %497, %496 : vector<8x32xf32>
    %499 = arith.divf %497, %498 : vector<8x32xf32>
    %500 = vector.extract_strided_slice %487 {offsets = [0, 64], sizes = [8, 32], strides = [1, 1]} : vector<8x128xf32> to vector<8x32xf32>
    %501 = math.tanh %500 : vector<8x32xf32>
    %502 = vector.extract_strided_slice %487 {offsets = [0, 96], sizes = [8, 32], strides = [1, 1]} : vector<8x128xf32> to vector<8x32xf32>
    %503 = arith.negf %502 : vector<8x32xf32>
    %504 = math.exp %503 : vector<8x32xf32>
    %cst_134 = arith.constant 1.000000e+00 : f32
    %505 = vector.broadcast %cst_134 : f32 to vector<8x32xf32>
    %506 = arith.addf %505, %504 : vector<8x32xf32>
    %507 = arith.divf %505, %506 : vector<8x32xf32>
    %508 = arith.mulf %499, %477 : vector<8x32xf32>
    %509 = arith.mulf %493, %501 : vector<8x32xf32>
    %510 = arith.addf %508, %509 : vector<8x32xf32>
    %511 = math.tanh %510 : vector<8x32xf32>
    %512 = arith.mulf %507, %511 : vector<8x32xf32>
    %513 = arith.index_cast %483 : i32 to index
    %c0_135 = arith.constant 0 : index
    %514 = vector.load %arg11[%513, %c0_135] : memref<64x32xf32, #tpu.memory_space<vmem>>, vector<8x32xf32>
    tpu.vector_store %arg11[%513, %c0_135], %512 {strides = array<i32>} : memref<64x32xf32, #tpu.memory_space<vmem>>, vector<8x32xf32>,
    %c7_i32_136 = arith.constant 7 : i32
    %c8_i32_137 = arith.constant 8 : i32
    %515 = arith.muli %c7_i32_136, %c8_i32_137 : i32
    %516 = tpu.assume_multiple %515, 8 : i32
    %517 = arith.index_cast %516 : i32 to index
    %c0_138 = arith.constant 0 : index
    %518 = vector.load %arg10[%517, %c0_138] : memref<64x128xf32, #tpu.memory_space<vmem>>, vector<8x128xf32>
    %cst_139 = arith.constant dense<0.000000e+00> : vector<8x128xf32>
    %519 = tpu.matmul %512, %281, %cst_139 {dimension_numbers = #tpu.dot_dimension_numbers<[1], [0], [0], [1], [0, 0, 1, 1], [], []>} : vector<8x32xf32>, vector<32x128xf32>, vector<8x128xf32> -> vector<8x128xf32>
    %520 = arith.addf %518, %519 : vector<8x128xf32>
    %521 = vector.extract_strided_slice %520 {offsets = [0, 0], sizes = [8, 32], strides = [1, 1]} : vector<8x128xf32> to vector<8x32xf32>
    %522 = arith.negf %521 : vector<8x32xf32>
    %523 = math.exp %522 : vector<8x32xf32>
    %cst_140 = arith.constant 1.000000e+00 : f32
    %524 = vector.broadcast %cst_140 : f32 to vector<8x32xf32>
    %525 = arith.addf %524, %523 : vector<8x32xf32>
    %526 = arith.divf %524, %525 : vector<8x32xf32>
    %527 = vector.extract_strided_slice %520 {offsets = [0, 32], sizes = [8, 32], strides = [1, 1]} : vector<8x128xf32> to vector<8x32xf32>
    %528 = arith.negf %527 : vector<8x32xf32>
    %529 = math.exp %528 : vector<8x32xf32>
    %cst_141 = arith.constant 1.000000e+00 : f32
    %530 = vector.broadcast %cst_141 : f32 to vector<8x32xf32>
    %531 = arith.addf %530, %529 : vector<8x32xf32>
    %532 = arith.divf %530, %531 : vector<8x32xf32>
    %533 = vector.extract_strided_slice %520 {offsets = [0, 64], sizes = [8, 32], strides = [1, 1]} : vector<8x128xf32> to vector<8x32xf32>
    %534 = math.tanh %533 : vector<8x32xf32>
    %535 = vector.extract_strided_slice %520 {offsets = [0, 96], sizes = [8, 32], strides = [1, 1]} : vector<8x128xf32> to vector<8x32xf32>
    %536 = arith.negf %535 : vector<8x32xf32>
    %537 = math.exp %536 : vector<8x32xf32>
    %cst_142 = arith.constant 1.000000e+00 : f32
    %538 = vector.broadcast %cst_142 : f32 to vector<8x32xf32>
    %539 = arith.addf %538, %537 : vector<8x32xf32>
    %540 = arith.divf %538, %539 : vector<8x32xf32>
    %541 = arith.mulf %532, %510 : vector<8x32xf32>
    %542 = arith.mulf %526, %534 : vector<8x32xf32>
    %543 = arith.addf %541, %542 : vector<8x32xf32>
    %544 = math.tanh %543 : vector<8x32xf32>
    %545 = arith.mulf %540, %544 : vector<8x32xf32>
    %546 = arith.index_cast %516 : i32 to index
    %c0_143 = arith.constant 0 : index
    %547 = vector.load %arg11[%546, %c0_143] : memref<64x32xf32, #tpu.memory_space<vmem>>, vector<8x32xf32>
    tpu.vector_store %arg11[%546, %c0_143], %545 {strides = array<i32>} : memref<64x32xf32, #tpu.memory_space<vmem>>, vector<8x32xf32>,
    %c8_i32_144 = arith.constant 8 : i32
    %548 = math.tanh %545 : vector<8x32xf32>
    %c0_145 = arith.constant 0 : index
    %c0_146 = arith.constant 0 : index
    %549 = vector.load %arg7[%c0_145, %c0_146] : memref<32x4xf32, #tpu.memory_space<vmem>>, vector<32x4xf32>
    %cst_147 = arith.constant dense<0.000000e+00> : vector<8x4xf32>
    %550 = tpu.matmul %548, %549, %cst_147 {dimension_numbers = #tpu.dot_dimension_numbers<[1], [0], [0], [1], [0, 0, 1, 1], [], []>} : vector<8x32xf32>, vector<32x4xf32>, vector<8x4xf32> -> vector<8x4xf32>
    %c0_148 = arith.constant 0 : index
    %c0_149 = arith.constant 0 : index
    %551 = vector.load %arg8[%c0_148, %c0_149] : memref<1x4xf32, #tpu.memory_space<vmem>>, vector<1x4xf32>
    %552 = vector.broadcast %551 : vector<1x4xf32> to vector<8x4xf32>
    %553 = arith.addf %550, %552 : vector<8x4xf32>
    %c0_150 = arith.constant 0 : index
    %c0_151 = arith.constant 0 : index
    %554 = vector.load %arg9[%c0_150, %c0_151] : memref<8x4xf32, #tpu.memory_space<vmem>>, vector<8x4xf32>
    tpu.vector_store %arg9[%c0_150, %c0_151], %553 {strides = array<i32>} : memref<8x4xf32, #tpu.memory_space<vmem>>, vector<8x4xf32>,
    return
  }
}

</mosaic_0001>

<llo_original>
// kernel: tpu_custom_call.1
$region0: #{tpu_custom_call.1}
  #allocation0 [shape = 'u32[]', space=smem, size = 0x4, offset = 0x4, fixed_abs, tag = 'smem constant byte address 0x4 - core index']
  #allocation1 [shape = 'u32[72,128]{1,0:T(1,128)}', space=vmem, size = 0x9000, scoped, tag = 'internal scratch']
  #allocation2 [shape = 'f32[64,128]{1,0:T(8,128)}', space=vmem, size = 0x8000, scoped, tag = 'scratch operand']
  #allocation3 [shape = 'f32[64,32]{1,0:T(8,128)}', space=vmem, size = 0x8000, scoped, tag = 'scratch operand']
  %s0 = inlined_call_operand.vmem [shape: f32[64,32], index: 0, kind: input, shape index: {}]
  %s1 = inlined_call_operand.vmem [shape: f32[32,128], index: 1, kind: input, shape index: {}]
  %s2 = inlined_call_operand.vmem [shape: f32[32,128], index: 2, kind: input, shape index: {}]
  %s3 = inlined_call_operand.vmem [shape: f32[1,128], index: 3, kind: input, shape index: {}]
  %s4 = inlined_call_operand.vmem [shape: f32[32,128], index: 4, kind: input, shape index: {}]
  %s5 = inlined_call_operand.hbm [shape: f32[32,128], index: 5, kind: input, shape index: {}]
  %s6 = inlined_call_operand.vmem [shape: f32[1,128], index: 6, kind: input, shape index: {}]
  %s7 = inlined_call_operand.vmem [shape: f32[32,4], index: 7, kind: input, shape index: {}]
  %s8 = inlined_call_operand.vmem [shape: f32[1,4], index: 8, kind: input, shape index: {}]
  %s9 = inlined_call_operand.vmem [shape: f32[8,4], index: 9, kind: output, shape index: {}]
  %s10 = sld [smem:[#allocation0]]
  $region50: #{tpu_custom_call.1} parent=0
    _
  %s12 = ssub.s32 1, %s10
  %s13 = scalar_select 0, %s12, %s10
  $region1: #{tpu_custom_call.1} parent=0
    #allocation4 [shape = 'u8[16384]{0}', space=vmem, size = 0x4000, scoped, tag = 'input window, operand 5, single buffered']
    #allocation5 [shape = 's32[1]{0}', space=sflag, size = 0x4, scoped, tag = 'scoped memory for tpu_custom_call.1']
    %14 = vsyncpa [#allocation5], 0
    // Predicated region
    $region2: #{tpu_custom_call.1} parent=1 // pred_check
      _
    $region3: #{tpu_custom_call.1} parent=1 // pred_check_branch
      %16 = sbr.rel (0) target = $region5
    $region4: #{tpu_custom_call.1} parent=1 // pred_region
      _
    $region5: #{tpu_custom_call.1} parent=1 // pred_fallthru
      _
    // Predicated region
    $region6: #{tpu_custom_call.1} parent=1 // pred_check
      _
    $region7: #{tpu_custom_call.1} parent=1 // pred_check_branch
      %18 = sbr.rel (0) target = $region9
    $region8: #{tpu_custom_call.1} parent=1 // pred_region
      _
    $region9: #{tpu_custom_call.1} parent=1 // pred_fallthru
      _
    // Predicated region
    $region10: #{tpu_custom_call.1} parent=1 // pred_check
      _
    $region11: #{tpu_custom_call.1} parent=1 // pred_check_branch
      %20 = sbr.rel (0) target = $region13
    $region12: #{tpu_custom_call.1} parent=1 // pred_region
      _
    $region13: #{tpu_custom_call.1} parent=1 // pred_fallthru
      _
    // Predicated region
    $region14: #{tpu_custom_call.1} parent=1 // pred_check
      _
    $region15: #{tpu_custom_call.1} parent=1 // pred_check_branch
      %22 = sbr.rel (0) target = $region17
    $region16: #{tpu_custom_call.1} parent=1 // pred_region
      _
    $region17: #{tpu_custom_call.1} parent=1 // pred_fallthru
      _
    // Predicated region
    $region18: #{tpu_custom_call.1} parent=1 // pred_check
      _
    $region19: #{tpu_custom_call.1} parent=1 // pred_check_branch
      %24 = sbr.rel (0) target = $region21
    $region20: #{tpu_custom_call.1} parent=1 // pred_region
      _
    $region21: #{tpu_custom_call.1} parent=1 // pred_fallthru
      _
    // Predicated region
    $region22: #{tpu_custom_call.1} parent=1 // pred_check
      _
    $region23: #{tpu_custom_call.1} parent=1 // pred_check_branch
      %26 = sbr.rel (0) target = $region25
    $region24: #{tpu_custom_call.1} parent=1 // pred_region
      %28 = vsyncadd [#allocation5], 0
      %s29 = sshll.u32 %s5, 4
      %s30 = int_to_ptr.hbm [resolvable:$true] %s29
      %s31 = sshll.u32 [#allocation4], 4
      %s32 = int_to_ptr.vmem [resolvable:$true] %s31
      %37 = dma.hbm_to_vmem [thread:$0]  %s30, 512, %s32, [#allocation5], 128, 128, 8
    $region25: #{tpu_custom_call.1} parent=1 // pred_fallthru
      _
    // Predicated region
    $region26: #{tpu_custom_call.1} parent=1 // pred_check
      _
    $region27: #{tpu_custom_call.1} parent=1 // pred_check_branch
      %39 = sbr.rel (0) target = $region29
    $region28: #{tpu_custom_call.1} parent=1 // pred_region
      _
    $region29: #{tpu_custom_call.1} parent=1 // pred_fallthru
      _
    // Predicated region
    $region30: #{tpu_custom_call.1} parent=1 // pred_check
      _
    $region31: #{tpu_custom_call.1} parent=1 // pred_check_branch
      %41 = sbr.rel (0) target = $region33
    $region32: #{tpu_custom_call.1} parent=1 // pred_region
      _
    $region33: #{tpu_custom_call.1} parent=1 // pred_fallthru
      _
    // Predicated region
    $region34: #{tpu_custom_call.1} parent=1 // pred_check
      _
    $region35: #{tpu_custom_call.1} parent=1 // pred_check_branch
      %43 = sbr.rel (0) target = $region37
    $region36: #{tpu_custom_call.1} parent=1 // pred_region
      _
    $region37: #{tpu_custom_call.1} parent=1 // pred_fallthru
      _
    // Predicated region
    $region38: #{tpu_custom_call.1} parent=1 // pred_check
      _
    $region39: #{tpu_custom_call.1} parent=1 // pred_check_branch
      %45 = sbr.rel (0) target = $region41
    $region40: #{tpu_custom_call.1} parent=1 // pred_region
      %47 = dma.done [#allocation5], 512
    $region41: #{tpu_custom_call.1} parent=1 // pred_fallthru
      _
    %v48 = vld [vmem:[%s0] sm:$0xff]
    %v49 = vld [vmem:[%s0 + $0x8] sm:$0xff]
    %v50 = vld [vmem:[%s0 + $0x10] sm:$0xff]
    %v51 = vld [vmem:[%s0 + $0x18] sm:$0xff]
    %v52 = vld [vmem:[%s0 + $0x20] sm:$0xff]
    %v53 = vld [vmem:[%s0 + $0x28] sm:$0xff]
    %v54 = vld [vmem:[%s0 + $0x30] sm:$0xff]
    %v55 = vld [vmem:[%s0 + $0x38] sm:$0xff]
    %v56 = vld [vmem:[%s1] sm:$0xff]
    %v57 = vld [vmem:[%s1 + $0x8] sm:$0xff]
    %v58 = vld [vmem:[%s1 + $0x10] sm:$0xff]
    %v59 = vld [vmem:[%s1 + $0x18] sm:$0xff]
    %v60 = vld [vmem:[%s3] sm:$0x1]
    %v62 = vperm.slane %v60, 0
    %vm64 = vcmask 261120
    %v66 = vsel %vm64, %v48, 0
    %v69 = vsel %vm64, %v49, 0
    %v72 = vsel %vm64, %v50, 0
    %v75 = vsel %vm64, %v51, 0
    %v78 = vsel %vm64, %v52, 0
    %v81 = vsel %vm64, %v53, 0
    %v84 = vsel %vm64, %v54, 0
    %v87 = vsel %vm64, %v55, 0
    %89 = vmatpush.msra.mxu0 0.0
    %90 = vmatpush.msra.mxu0 0.0
    %91 = vmatpush.msra.mxu0 0.0
    %92 = vmatpush.msra.mxu0 0.0
    %93 = vmatpush.msra.mxu0 0.0
    %94 = vmatpush.msra.mxu0 0.0
    %95 = vmatpush.msra.mxu0 0.0
    %96 = vmatpush.msra.mxu0 0.0
    %97 = vmatpush.msra.mxu0 0.0
    %98 = vmatpush.msra.mxu0 0.0
    %99 = vmatpush.msra.mxu0 0.0
    %100 = vmatpush.msra.mxu0 0.0
    %101 = vmatpush.msra.mxu0 %v59
    %102 = vmatpush.msra.mxu0 %v58
    %103 = vmatpush.msra.mxu0 %v57
    %104 = vmatpush.msra.mxu0 %v56
    %105 = vmatmul.f32.gmra.mxu0 %v66
    %v106 = vpop.f32.mrf.mxu0
    %v107 = vadd.f32 %v62, %v106
    %108 = vmatmul.f32.gmra.mxu0 %v69
    %v109 = vpop.f32.mrf.mxu0
    %v110 = vadd.f32 %v62, %v109
    %111 = vmatmul.f32.gmra.mxu0 %v72
    %v112 = vpop.f32.mrf.mxu0
    %v113 = vadd.f32 %v62, %v112
    %114 = vmatmul.f32.gmra.mxu0 %v75
    %v115 = vpop.f32.mrf.mxu0
    %v116 = vadd.f32 %v62, %v115
    %117 = vmatmul.f32.gmra.mxu0 %v78
    %v118 = vpop.f32.mrf.mxu0
    %v119 = vadd.f32 %v62, %v118
    %120 = vmatmul.f32.gmra.mxu0 %v81
    %v121 = vpop.f32.mrf.mxu0
    %v122 = vadd.f32 %v62, %v121
    %123 = vmatmul.f32.gmra.mxu0 %v84
    %v124 = vpop.f32.mrf.mxu0
    %v125 = vadd.f32 %v62, %v124
    %126 = vmatmul.f32.gmra.mxu0 %v87
    %v127 = vpop.f32.mrf.mxu0
    %v128 = vadd.f32 %v62, %v127
    %129 = vdwg.mxu0
    %130 = vst [vmem:[#allocation2] sm:$0xff] %v107
    %131 = vst [vmem:[#allocation2 + $0x8] sm:$0xff] %v110
    %132 = vst [vmem:[#allocation2 + $0x10] sm:$0xff] %v113
    %133 = vst [vmem:[#allocation2 + $0x18] sm:$0xff] %v116
    %134 = vst [vmem:[#allocation2 + $0x20] sm:$0xff] %v119
    %135 = vst [vmem:[#allocation2 + $0x28] sm:$0xff] %v122
    %136 = vst [vmem:[#allocation2 + $0x30] sm:$0xff] %v125
    %137 = vst [vmem:[#allocation2 + $0x38] sm:$0xff] %v128
    %v138 = vld [vmem:[%s2] sm:$0xff]
    %v139 = vld [vmem:[%s2 + $0x8] sm:$0xff]
    %v140 = vld [vmem:[%s2 + $0x10] sm:$0xff]
    %v141 = vld [vmem:[%s2 + $0x18] sm:$0xff]
    %v142 = vld [vmem:[#allocation2] sm:$0xff]
    %v144 = vsel %vm64, 0.0, 0
    %146 = vmatpush.msra.mxu0 0.0
    %147 = vmatpush.msra.mxu0 0.0
    %148 = vmatpush.msra.mxu0 0.0
    %149 = vmatpush.msra.mxu0 0.0
    %150 = vmatpush.msra.mxu0 0.0
    %151 = vmatpush.msra.mxu0 0.0
    %152 = vmatpush.msra.mxu0 0.0
    %153 = vmatpush.msra.mxu0 0.0
    %154 = vmatpush.msra.mxu0 0.0
    %155 = vmatpush.msra.mxu0 0.0
    %156 = vmatpush.msra.mxu0 0.0
    %157 = vmatpush.msra.mxu0 0.0
    %158 = vmatpush.msra.mxu0 %v141
    %159 = vmatpush.msra.mxu0 %v140
    %160 = vmatpush.msra.mxu0 %v139
    %161 = vmatpush.msra.mxu0 %v138
    %162 = vmatmul.f32.gmra.mxu0 %v144
    %v163 = vpop.f32.mrf.mxu0
    %v164 = vadd.f32 0.0, %v163
    %165 = vdwg.mxu0
    %v166 = vadd.f32 %v142, %v164
    %v167 = vxor.u32 %v166, 2147483648
    %v168 = vmul.f32 %v167, 1.442695
    %v169 = vpow.pop %v168
    %v170 = vadd.f32 %v169, 1.0
    %v171 = vrcp.pop %v170
    %v172 = vmul.f32 %v170, %v171
    %v173 = vsub.f32 1.0, %v172
    %v174 = vmul.f32 %v171, %v173
    %v175 = vadd.f32 %v171, %v174
    %vm176 = vweird.f32 %v170
    %vm177 = vweird.f32 %v171
    %vm178 = vmor %vm176, %vm177
    %v179 = vsel %vm178, %v171, %v175
    %v180 = vand.u32 2147483647, %v170
    %vm181 = vcmp.eq.f32.partialorder %v180, 8.507059e+37
    %v182 = vand.u32 %v170, 2147483648
    %v183 = vor.u32 1.1754944e-38, %v182
    %v184 = vsel %vm181, %v183, %v179
    %v185 = vmul.f32 1.0, %v184
    %v186 = vtanh.pop %v166
    %v187 = vmul.f32 %v185, 0.0
    %189 = vrot.lane.b32.xlu0 %v186, 64
    %v190 = vpop.permute.xlu0 %189
    %v192 = vmul.f32 %v185, %v190
    %194 = vrot.lane.b32.xlu0 %v192, 32
    %v195 = vpop.permute.xlu0 %194
    %v197 = vadd.f32 %v187, %v195
    %v198 = vtanh.pop %v197
    %200 = vrot.lane.b32.xlu0 %v198, 64
    %v201 = vpop.permute.xlu0 %200
    %v203 = vmul.f32 %v185, %v201
    %205 = vrot.lane.b32.xlu0 %v203, 32
    %v206 = vpop.permute.xlu0 %205
    %208 = vst.msk [vmem:[#allocation3] sm:$0xff] %vm64, %v206
    %s209 = scalar_lea.vmem [#allocation2], 8
    %v210 = vld [vmem:[%s209] sm:$0xff]
    %v211 = vsel %vm64, %v206, 0
    %213 = vmatpush.msra.mxu0 0.0
    %214 = vmatpush.msra.mxu0 0.0
    %215 = vmatpush.msra.mxu0 0.0
    %216 = vmatpush.msra.mxu0 0.0
    %217 = vmatpush.msra.mxu0 0.0
    %218 = vmatpush.msra.mxu0 0.0
    %219 = vmatpush.msra.mxu0 0.0
    %220 = vmatpush.msra.mxu0 0.0
    %221 = vmatpush.msra.mxu0 0.0
    %222 = vmatpush.msra.mxu0 0.0
    %223 = vmatpush.msra.mxu0 0.0
    %224 = vmatpush.msra.mxu0 0.0
    %225 = vmatpush.msra.mxu0 %v141
    %226 = vmatpush.msra.mxu0 %v140
    %227 = vmatpush.msra.mxu0 %v139
    %228 = vmatpush.msra.mxu0 %v138
    %229 = vmatmul.f32.gmra.mxu0 %v211
    %v230 = vpop.f32.mrf.mxu0
    %v231 = vadd.f32 0.0, %v230
    %232 = vdwg.mxu0
    %v233 = vadd.f32 %v210, %v231
    %v234 = vxor.u32 %v233, 2147483648
    %v235 = vmul.f32 %v234, 1.442695
    %v236 = vpow.pop %v235
    %v237 = vadd.f32 %v236, 1.0
    %v238 = vrcp.pop %v237
    %v239 = vmul.f32 %v237, %v238
    %v240 = vsub.f32 1.0, %v239
    %v241 = vmul.f32 %v238, %v240
    %v242 = vadd.f32 %v238, %v241
    %vm243 = vweird.f32 %v237
    %vm244 = vweird.f32 %v238
    %vm245 = vmor %vm243, %vm244
    %v246 = vsel %vm245, %v238, %v242
    %v247 = vand.u32 2147483647, %v237
    %vm248 = vcmp.eq.f32.partialorder %v247, 8.507059e+37
    %v249 = vand.u32 %v237, 2147483648
    %v250 = vor.u32 1.1754944e-38, %v249
    %v251 = vsel %vm248, %v250, %v246
    %v252 = vmul.f32 1.0, %v251
    %v253 = vtanh.pop %v233
    %v254 = vmul.f32 %v252, %v197
    %256 = vrot.lane.b32.xlu0 %v253, 64
    %v257 = vpop.permute.xlu0 %256
    %v259 = vmul.f32 %v252, %v257
    %261 = vrot.lane.b32.xlu0 %v259, 32
    %v262 = vpop.permute.xlu0 %261
    %v264 = vadd.f32 %v254, %v262
    %v265 = vtanh.pop %v264
    %267 = vrot.lane.b32.xlu0 %v265, 64
    %v268 = vpop.permute.xlu0 %267
    %v270 = vmul.f32 %v252, %v268
    %272 = vrot.lane.b32.xlu0 %v270, 32
    %v273 = vpop.permute.xlu0 %272
    %s275 = scalar_lea.vmem [#allocation3], 8
    %276 = vst.msk [vmem:[%s275] sm:$0xff] %vm64, %v273
    %s277 = scalar_lea.vmem [#allocation2], 16
    %v278 = vld [vmem:[%s277] sm:$0xff]
    %v279 = vsel %vm64, %v273, 0
    %281 = vmatpush.msra.mxu0 0.0
    %282 = vmatpush.msra.mxu0 0.0
    %283 = vmatpush.msra.mxu0 0.0
    %284 = vmatpush.msra.mxu0 0.0
    %285 = vmatpush.msra.mxu0 0.0
    %286 = vmatpush.msra.mxu0 0.0
    %287 = vmatpush.msra.mxu0 0.0
    %288 = vmatpush.msra.mxu0 0.0
    %289 = vmatpush.msra.mxu0 0.0
    %290 = vmatpush.msra.mxu0 0.0
    %291 = vmatpush.msra.mxu0 0.0
    %292 = vmatpush.msra.mxu0 0.0
    %293 = vmatpush.msra.mxu0 %v141
    %294 = vmatpush.msra.mxu0 %v140
    %295 = vmatpush.msra.mxu0 %v139
    %296 = vmatpush.msra.mxu0 %v138
    %297 = vmatmul.f32.gmra.mxu0 %v279
    %v298 = vpop.f32.mrf.mxu0
    %v299 = vadd.f32 0.0, %v298
    %300 = vdwg.mxu0
    %v301 = vadd.f32 %v278, %v299
    %v302 = vxor.u32 %v301, 2147483648
    %v303 = vmul.f32 %v302, 1.442695
    %v304 = vpow.pop %v303
    %v305 = vadd.f32 %v304, 1.0
    %v306 = vrcp.pop %v305
    %v307 = vmul.f32 %v305, %v306
    %v308 = vsub.f32 1.0, %v307
    %v309 = vmul.f32 %v306, %v308
    %v310 = vadd.f32 %v306, %v309
    %vm311 = vweird.f32 %v305
    %vm312 = vweird.f32 %v306
    %vm313 = vmor %vm311, %vm312
    %v314 = vsel %vm313, %v306, %v310
    %v315 = vand.u32 2147483647, %v305
    %vm316 = vcmp.eq.f32.partialorder %v315, 8.507059e+37
    %v317 = vand.u32 %v305, 2147483648
    %v318 = vor.u32 1.1754944e-38, %v317
    %v319 = vsel %vm316, %v318, %v314
    %v320 = vmul.f32 1.0, %v319
    %v321 = vtanh.pop %v301
    %v322 = vmul.f32 %v320, %v264
    %324 = vrot.lane.b32.xlu0 %v321, 64
    %v325 = vpop.permute.xlu0 %324
    %v327 = vmul.f32 %v320, %v325
    %329 = vrot.lane.b32.xlu0 %v327, 32
    %v330 = vpop.permute.xlu0 %329
    %v332 = vadd.f32 %v322, %v330
    %v333 = vtanh.pop %v332
    %335 = vrot.lane.b32.xlu0 %v333, 64
    %v336 = vpop.permute.xlu0 %335
    %v338 = vmul.f32 %v320, %v336
    %340 = vrot.lane.b32.xlu0 %v338, 32
    %v341 = vpop.permute.xlu0 %340
    %s343 = scalar_lea.vmem [#allocation3], 16
    %344 = vst.msk [vmem:[%s343] sm:$0xff] %vm64, %v341
    %s345 = scalar_lea.vmem [#allocation2], 24
    %v346 = vld [vmem:[%s345] sm:$0xff]
    %v347 = vsel %vm64, %v341, 0
    %349 = vmatpush.msra.mxu0 0.0
    %350 = vmatpush.msra.mxu0 0.0
    %351 = vmatpush.msra.mxu0 0.0
    %352 = vmatpush.msra.mxu0 0.0
    %353 = vmatpush.msra.mxu0 0.0
    %354 = vmatpush.msra.mxu0 0.0
    %355 = vmatpush.msra.mxu0 0.0
    %356 = vmatpush.msra.mxu0 0.0
    %357 = vmatpush.msra.mxu0 0.0
    %358 = vmatpush.msra.mxu0 0.0
    %359 = vmatpush.msra.mxu0 0.0
    %360 = vmatpush.msra.mxu0 0.0
    %361 = vmatpush.msra.mxu0 %v141
    %362 = vmatpush.msra.mxu0 %v140
    %363 = vmatpush.msra.mxu0 %v139
    %364 = vmatpush.msra.mxu0 %v138
    %365 = vmatmul.f32.gmra.mxu0 %v347
    %v366 = vpop.f32.mrf.mxu0
    %v367 = vadd.f32 0.0, %v366
    %368 = vdwg.mxu0
    %v369 = vadd.f32 %v346, %v367
    %v370 = vxor.u32 %v369, 2147483648
    %v371 = vmul.f32 %v370, 1.442695
    %v372 = vpow.pop %v371
    %v373 = vadd.f32 %v372, 1.0
    %v374 = vrcp.pop %v373
    %v375 = vmul.f32 %v373, %v374
    %v376 = vsub.f32 1.0, %v375
    %v377 = vmul.f32 %v374, %v376
    %v378 = vadd.f32 %v374, %v377
    %vm379 = vweird.f32 %v373
    %vm380 = vweird.f32 %v374
    %vm381 = vmor %vm379, %vm380
    %v382 = vsel %vm381, %v374, %v378
    %v383 = vand.u32 2147483647, %v373
    %vm384 = vcmp.eq.f32.partialorder %v383, 8.507059e+37
    %v385 = vand.u32 %v373, 2147483648
    %v386 = vor.u32 1.1754944e-38, %v385
    %v387 = vsel %vm384, %v386, %v382
    %v388 = vmul.f32 1.0, %v387
    %v389 = vtanh.pop %v369
    %v390 = vmul.f32 %v388, %v332
    %392 = vrot.lane.b32.xlu0 %v389, 64
    %v393 = vpop.permute.xlu0 %392
    %v395 = vmul.f32 %v388, %v393
    %397 = vrot.lane.b32.xlu0 %v395, 32
    %v398 = vpop.permute.xlu0 %397
    %v400 = vadd.f32 %v390, %v398
    %v401 = vtanh.pop %v400
    %403 = vrot.lane.b32.xlu0 %v401, 64
    %v404 = vpop.permute.xlu0 %403
    %v406 = vmul.f32 %v388, %v404
    %408 = vrot.lane.b32.xlu0 %v406, 32
    %v409 = vpop.permute.xlu0 %408
    %s411 = scalar_lea.vmem [#allocation3], 24
    %412 = vst.msk [vmem:[%s411] sm:$0xff] %vm64, %v409
    %s413 = scalar_lea.vmem [#allocation2], 32
    %v414 = vld [vmem:[%s413] sm:$0xff]
    %v415 = vsel %vm64, %v409, 0
    %417 = vmatpush.msra.mxu0 0.0
    %418 = vmatpush.msra.mxu0 0.0
    %419 = vmatpush.msra.mxu0 0.0
    %420 = vmatpush.msra.mxu0 0.0
    %421 = vmatpush.msra.mxu0 0.0
    %422 = vmatpush.msra.mxu0 0.0
    %423 = vmatpush.msra.mxu0 0.0
    %424 = vmatpush.msra.mxu0 0.0
    %425 = vmatpush.msra.mxu0 0.0
    %426 = vmatpush.msra.mxu0 0.0
    %427 = vmatpush.msra.mxu0 0.0
    %428 = vmatpush.msra.mxu0 0.0
    %429 = vmatpush.msra.mxu0 %v141
    %430 = vmatpush.msra.mxu0 %v140
    %431 = vmatpush.msra.mxu0 %v139
    %432 = vmatpush.msra.mxu0 %v138
    %433 = vmatmul.f32.gmra.mxu0 %v415
    %v434 = vpop.f32.mrf.mxu0
    %v435 = vadd.f32 0.0, %v434
    %436 = vdwg.mxu0
    %v437 = vadd.f32 %v414, %v435
    %v438 = vxor.u32 %v437, 2147483648
    %v439 = vmul.f32 %v438, 1.442695
    %v440 = vpow.pop %v439
    %v441 = vadd.f32 %v440, 1.0
    %v442 = vrcp.pop %v441
    %v443 = vmul.f32 %v441, %v442
    %v444 = vsub.f32 1.0, %v443
    %v445 = vmul.f32 %v442, %v444
    %v446 = vadd.f32 %v442, %v445
    %vm447 = vweird.f32 %v441
    %vm448 = vweird.f32 %v442
    %vm449 = vmor %vm447, %vm448
    %v450 = vsel %vm449, %v442, %v446
    %v451 = vand.u32 2147483647, %v441
    %vm452 = vcmp.eq.f32.partialorder %v451, 8.507059e+37
    %v453 = vand.u32 %v441, 2147483648
    %v454 = vor.u32 1.1754944e-38, %v453
    %v455 = vsel %vm452, %v454, %v450
    %v456 = vmul.f32 1.0, %v455
    %v457 = vtanh.pop %v437
    %v458 = vmul.f32 %v456, %v400
    %460 = vrot.lane.b32.xlu0 %v457, 64
    %v461 = vpop.permute.xlu0 %460
    %v463 = vmul.f32 %v456, %v461
    %465 = vrot.lane.b32.xlu0 %v463, 32
    %v466 = vpop.permute.xlu0 %465
    %v468 = vadd.f32 %v458, %v466
    %v469 = vtanh.pop %v468
    %471 = vrot.lane.b32.xlu0 %v469, 64
    %v472 = vpop.permute.xlu0 %471
    %v474 = vmul.f32 %v456, %v472
    %476 = vrot.lane.b32.xlu0 %v474, 32
    %v477 = vpop.permute.xlu0 %476
    %s479 = scalar_lea.vmem [#allocation3], 32
    %480 = vst.msk [vmem:[%s479] sm:$0xff] %vm64, %v477
    %s481 = scalar_lea.vmem [#allocation2], 40
    %v482 = vld [vmem:[%s481] sm:$0xff]
    %v483 = vsel %vm64, %v477, 0
    %485 = vmatpush.msra.mxu0 0.0
    %486 = vmatpush.msra.mxu0 0.0
    %487 = vmatpush.msra.mxu0 0.0
    %488 = vmatpush.msra.mxu0 0.0
    %489 = vmatpush.msra.mxu0 0.0
    %490 = vmatpush.msra.mxu0 0.0
    %491 = vmatpush.msra.mxu0 0.0
    %492 = vmatpush.msra.mxu0 0.0
    %493 = vmatpush.msra.mxu0 0.0
    %494 = vmatpush.msra.mxu0 0.0
    %495 = vmatpush.msra.mxu0 0.0
    %496 = vmatpush.msra.mxu0 0.0
    %497 = vmatpush.msra.mxu0 %v141
    %498 = vmatpush.msra.mxu0 %v140
    %499 = vmatpush.msra.mxu0 %v139
    %500 = vmatpush.msra.mxu0 %v138
    %501 = vmatmul.f32.gmra.mxu0 %v483
    %v502 = vpop.f32.mrf.mxu0
    %v503 = vadd.f32 0.0, %v502
    %504 = vdwg.mxu0
    %v505 = vadd.f32 %v482, %v503
    %v506 = vxor.u32 %v505, 2147483648
    %v507 = vmul.f32 %v506, 1.442695
    %v508 = vpow.pop %v507
    %v509 = vadd.f32 %v508, 1.0
    %v510 = vrcp.pop %v509
    %v511 = vmul.f32 %v509, %v510
    %v512 = vsub.f32 1.0, %v511
    %v513 = vmul.f32 %v510, %v512
    %v514 = vadd.f32 %v510, %v513
    %vm515 = vweird.f32 %v509
    %vm516 = vweird.f32 %v510
    %vm517 = vmor %vm515, %vm516
    %v518 = vsel %vm517, %v510, %v514
    %v519 = vand.u32 2147483647, %v509
    %vm520 = vcmp.eq.f32.partialorder %v519, 8.507059e+37
    %v521 = vand.u32 %v509, 2147483648
    %v522 = vor.u32 1.1754944e-38, %v521
    %v523 = vsel %vm520, %v522, %v518
    %v524 = vmul.f32 1.0, %v523
    %v525 = vtanh.pop %v505
    %v526 = vmul.f32 %v524, %v468
    %528 = vrot.lane.b32.xlu0 %v525, 64
    %v529 = vpop.permute.xlu0 %528
    %v531 = vmul.f32 %v524, %v529
    %533 = vrot.lane.b32.xlu0 %v531, 32
    %v534 = vpop.permute.xlu0 %533
    %v536 = vadd.f32 %v526, %v534
    %v537 = vtanh.pop %v536
    %539 = vrot.lane.b32.xlu0 %v537, 64
    %v540 = vpop.permute.xlu0 %539
    %v542 = vmul.f32 %v524, %v540
    %544 = vrot.lane.b32.xlu0 %v542, 32
    %v545 = vpop.permute.xlu0 %544
    %s547 = scalar_lea.vmem [#allocation3], 40
    %548 = vst.msk [vmem:[%s547] sm:$0xff] %vm64, %v545
    %s549 = scalar_lea.vmem [#allocation2], 48
    %v550 = vld [vmem:[%s549] sm:$0xff]
    %v551 = vsel %vm64, %v545, 0
    %553 = vmatpush.msra.mxu0 0.0
    %554 = vmatpush.msra.mxu0 0.0
    %555 = vmatpush.msra.mxu0 0.0
    %556 = vmatpush.msra.mxu0 0.0
    %557 = vmatpush.msra.mxu0 0.0
    %558 = vmatpush.msra.mxu0 0.0
    %559 = vmatpush.msra.mxu0 0.0
    %560 = vmatpush.msra.mxu0 0.0
    %561 = vmatpush.msra.mxu0 0.0
    %562 = vmatpush.msra.mxu0 0.0
    %563 = vmatpush.msra.mxu0 0.0
    %564 = vmatpush.msra.mxu0 0.0
    %565 = vmatpush.msra.mxu0 %v141
    %566 = vmatpush.msra.mxu0 %v140
    %567 = vmatpush.msra.mxu0 %v139
    %568 = vmatpush.msra.mxu0 %v138
    %569 = vmatmul.f32.gmra.mxu0 %v551
    %v570 = vpop.f32.mrf.mxu0
    %v571 = vadd.f32 0.0, %v570
    %572 = vdwg.mxu0
    %v573 = vadd.f32 %v550, %v571
    %v574 = vxor.u32 %v573, 2147483648
    %v575 = vmul.f32 %v574, 1.442695
    %v576 = vpow.pop %v575
    %v577 = vadd.f32 %v576, 1.0
    %v578 = vrcp.pop %v577
    %v579 = vmul.f32 %v577, %v578
    %v580 = vsub.f32 1.0, %v579
    %v581 = vmul.f32 %v578, %v580
    %v582 = vadd.f32 %v578, %v581
    %vm583 = vweird.f32 %v577
    %vm584 = vweird.f32 %v578
    %vm585 = vmor %vm583, %vm584
    %v586 = vsel %vm585, %v578, %v582
    %v587 = vand.u32 2147483647, %v577
    %vm588 = vcmp.eq.f32.partialorder %v587, 8.507059e+37
    %v589 = vand.u32 %v577, 2147483648
    %v590 = vor.u32 1.1754944e-38, %v589
    %v591 = vsel %vm588, %v590, %v586
    %v592 = vmul.f32 1.0, %v591
    %v593 = vtanh.pop %v573
    %v594 = vmul.f32 %v592, %v536
    %596 = vrot.lane.b32.xlu0 %v593, 64
    %v597 = vpop.permute.xlu0 %596
    %v599 = vmul.f32 %v592, %v597
    %601 = vrot.lane.b32.xlu0 %v599, 32
    %v602 = vpop.permute.xlu0 %601
    %v604 = vadd.f32 %v594, %v602
    %v605 = vtanh.pop %v604
    %607 = vrot.lane.b32.xlu0 %v605, 64
    %v608 = vpop.permute.xlu0 %607
    %v610 = vmul.f32 %v592, %v608
    %612 = vrot.lane.b32.xlu0 %v610, 32
    %v613 = vpop.permute.xlu0 %612
    %s615 = scalar_lea.vmem [#allocation3], 48
    %616 = vst.msk [vmem:[%s615] sm:$0xff] %vm64, %v613
    %s617 = scalar_lea.vmem [#allocation2], 56
    %v618 = vld [vmem:[%s617] sm:$0xff]
    %v619 = vsel %vm64, %v613, 0
    %621 = vmatpush.msra.mxu0 0.0
    %622 = vmatpush.msra.mxu0 0.0
    %623 = vmatpush.msra.mxu0 0.0
    %624 = vmatpush.msra.mxu0 0.0
    %625 = vmatpush.msra.mxu0 0.0
    %626 = vmatpush.msra.mxu0 0.0
    %627 = vmatpush.msra.mxu0 0.0
    %628 = vmatpush.msra.mxu0 0.0
    %629 = vmatpush.msra.mxu0 0.0
    %630 = vmatpush.msra.mxu0 0.0
    %631 = vmatpush.msra.mxu0 0.0
    %632 = vmatpush.msra.mxu0 0.0
    %633 = vmatpush.msra.mxu0 %v141
    %634 = vmatpush.msra.mxu0 %v140
    %635 = vmatpush.msra.mxu0 %v139
    %636 = vmatpush.msra.mxu0 %v138
    %637 = vmatmul.f32.gmra.mxu0 %v619
    %v638 = vpop.f32.mrf.mxu0
    %v639 = vadd.f32 0.0, %v638
    %640 = vdwg.mxu0
    %v641 = vadd.f32 %v618, %v639
    %v642 = vxor.u32 %v641, 2147483648
    %v643 = vmul.f32 %v642, 1.442695
    %v644 = vpow.pop %v643
    %v645 = vadd.f32 %v644, 1.0
    %v646 = vrcp.pop %v645
    %v647 = vmul.f32 %v645, %v646
    %v648 = vsub.f32 1.0, %v647
    %v649 = vmul.f32 %v646, %v648
    %v650 = vadd.f32 %v646, %v649
    %vm651 = vweird.f32 %v645
    %vm652 = vweird.f32 %v646
    %vm653 = vmor %vm651, %vm652
    %v654 = vsel %vm653, %v646, %v650
    %v655 = vand.u32 2147483647, %v645
    %vm656 = vcmp.eq.f32.partialorder %v655, 8.507059e+37
    %v657 = vand.u32 %v645, 2147483648
    %v658 = vor.u32 1.1754944e-38, %v657
    %v659 = vsel %vm656, %v658, %v654
    %v660 = vmul.f32 1.0, %v659
    %v661 = vtanh.pop %v641
    %v662 = vmul.f32 %v660, %v604
    %664 = vrot.lane.b32.xlu0 %v661, 64
    %v665 = vpop.permute.xlu0 %664
    %v667 = vmul.f32 %v660, %v665
    %669 = vrot.lane.b32.xlu0 %v667, 32
    %v670 = vpop.permute.xlu0 %669
    %v672 = vadd.f32 %v662, %v670
    %v673 = vtanh.pop %v672
    %675 = vrot.lane.b32.xlu0 %v673, 64
    %v676 = vpop.permute.xlu0 %675
    %v678 = vmul.f32 %v660, %v676
    %680 = vrot.lane.b32.xlu0 %v678, 32
    %v681 = vpop.permute.xlu0 %680
    %s683 = scalar_lea.vmem [#allocation3], 56
    %684 = vst.msk [vmem:[%s683] sm:$0xff] %vm64, %v681
    %v685 = vld [vmem:[#allocation3] sm:$0xff]
    %v686 = vld [vmem:[#allocation3 + $0x8] sm:$0xff]
    %v687 = vld [vmem:[#allocation3 + $0x10] sm:$0xff]
    %v688 = vld [vmem:[#allocation3 + $0x18] sm:$0xff]
    %v689 = vld [vmem:[#allocation3 + $0x20] sm:$0xff]
    %v690 = vld [vmem:[#allocation3 + $0x28] sm:$0xff]
    %v691 = vld [vmem:[#allocation3 + $0x30] sm:$0xff]
    %v692 = vld [vmem:[#allocation3 + $0x38] sm:$0xff]
    %v693 = vld [vmem:[%s4] sm:$0xff]
    %v694 = vld [vmem:[%s4 + $0x8] sm:$0xff]
    %v695 = vld [vmem:[%s4 + $0x10] sm:$0xff]
    %v696 = vld [vmem:[%s4 + $0x18] sm:$0xff]
    %v697 = vld [vmem:[%s6] sm:$0x1]
    %v699 = vperm.slane %v697, 0
    %v702 = vsel %vm64, %v685, 0
    %v705 = vsel %vm64, %v686, 0
    %v708 = vsel %vm64, %v687, 0
    %v711 = vsel %vm64, %v688, 0
    %v714 = vsel %vm64, %v689, 0
    %v717 = vsel %vm64, %v690, 0
    %v720 = vsel %vm64, %v691, 0
    %v723 = vsel %vm64, %v692, 0
    %725 = vmatpush.msra.mxu0 0.0
    %726 = vmatpush.msra.mxu0 0.0
    %727 = vmatpush.msra.mxu0 0.0
    %728 = vmatpush.msra.mxu0 0.0
    %729 = vmatpush.msra.mxu0 0.0
    %730 = vmatpush.msra.mxu0 0.0
    %731 = vmatpush.msra.mxu0 0.0
    %732 = vmatpush.msra.mxu0 0.0
    %733 = vmatpush.msra.mxu0 0.0
    %734 = vmatpush.msra.mxu0 0.0
    %735 = vmatpush.msra.mxu0 0.0
    %736 = vmatpush.msra.mxu0 0.0
    %737 = vmatpush.msra.mxu0 %v696
    %738 = vmatpush.msra.mxu0 %v695
    %739 = vmatpush.msra.mxu0 %v694
    %740 = vmatpush.msra.mxu0 %v693
    %741 = vmatmul.f32.gmra.mxu0 %v702
    %v742 = vpop.f32.mrf.mxu0
    %v743 = vadd.f32 %v699, %v742
    %744 = vmatmul.f32.gmra.mxu0 %v705
    %v745 = vpop.f32.mrf.mxu0
    %v746 = vadd.f32 %v699, %v745
    %747 = vmatmul.f32.gmra.mxu0 %v708
    %v748 = vpop.f32.mrf.mxu0
    %v749 = vadd.f32 %v699, %v748
    %750 = vmatmul.f32.gmra.mxu0 %v711
    %v751 = vpop.f32.mrf.mxu0
    %v752 = vadd.f32 %v699, %v751
    %753 = vmatmul.f32.gmra.mxu0 %v714
    %v754 = vpop.f32.mrf.mxu0
    %v755 = vadd.f32 %v699, %v754
    %756 = vmatmul.f32.gmra.mxu0 %v717
    %v757 = vpop.f32.mrf.mxu0
    %v758 = vadd.f32 %v699, %v757
    %759 = vmatmul.f32.gmra.mxu0 %v720
    %v760 = vpop.f32.mrf.mxu0
    %v761 = vadd.f32 %v699, %v760
    %762 = vmatmul.f32.gmra.mxu0 %v723
    %v763 = vpop.f32.mrf.mxu0
    %v764 = vadd.f32 %v699, %v763
    %765 = vdwg.mxu0
    %766 = vst [vmem:[#allocation2] sm:$0xff] %v743
    %767 = vst [vmem:[#allocation2 + $0x8] sm:$0xff] %v746
    %768 = vst [vmem:[#allocation2 + $0x10] sm:$0xff] %v749
    %769 = vst [vmem:[#allocation2 + $0x18] sm:$0xff] %v752
    %770 = vst [vmem:[#allocation2 + $0x20] sm:$0xff] %v755
    %771 = vst [vmem:[#allocation2 + $0x28] sm:$0xff] %v758
    %772 = vst [vmem:[#allocation2 + $0x30] sm:$0xff] %v761
    %773 = vst [vmem:[#allocation2 + $0x38] sm:$0xff] %v764
    %v774 = vld [vmem:[#allocation4] sm:$0xff]
    %v775 = vld [vmem:[#allocation4 + $0x8] sm:$0xff]
    %v776 = vld [vmem:[#allocation4 + $0x10] sm:$0xff]
    %v777 = vld [vmem:[#allocation4 + $0x18] sm:$0xff]
    %v778 = vld [vmem:[#allocation2] sm:$0xff]
    %779 = vmatpush.msra.mxu0 0.0
    %780 = vmatpush.msra.mxu0 0.0
    %781 = vmatpush.msra.mxu0 0.0
    %782 = vmatpush.msra.mxu0 0.0
    %783 = vmatpush.msra.mxu0 0.0
    %784 = vmatpush.msra.mxu0 0.0
    %785 = vmatpush.msra.mxu0 0.0
    %786 = vmatpush.msra.mxu0 0.0
    %787 = vmatpush.msra.mxu0 0.0
    %788 = vmatpush.msra.mxu0 0.0
    %789 = vmatpush.msra.mxu0 0.0
    %790 = vmatpush.msra.mxu0 0.0
    %791 = vmatpush.msra.mxu0 %v777
    %792 = vmatpush.msra.mxu0 %v776
    %793 = vmatpush.msra.mxu0 %v775
    %794 = vmatpush.msra.mxu0 %v774
    %795 = vmatmul.f32.gmra.mxu0 %v144
    %v796 = vpop.f32.mrf.mxu0
    %v797 = vadd.f32 0.0, %v796
    %798 = vdwg.mxu0
    %v799 = vadd.f32 %v778, %v797
    %v800 = vxor.u32 %v799, 2147483648
    %v801 = vmul.f32 %v800, 1.442695
    %v802 = vpow.pop %v801
    %v803 = vadd.f32 %v802, 1.0
    %v804 = vrcp.pop %v803
    %v805 = vmul.f32 %v803, %v804
    %v806 = vsub.f32 1.0, %v805
    %v807 = vmul.f32 %v804, %v806
    %v808 = vadd.f32 %v804, %v807
    %vm809 = vweird.f32 %v803
    %vm810 = vweird.f32 %v804
    %vm811 = vmor %vm809, %vm810
    %v812 = vsel %vm811, %v804, %v808
    %v813 = vand.u32 2147483647, %v803
    %vm814 = vcmp.eq.f32.partialorder %v813, 8.507059e+37
    %v815 = vand.u32 %v803, 2147483648
    %v816 = vor.u32 1.1754944e-38, %v815
    %v817 = vsel %vm814, %v816, %v812
    %v818 = vmul.f32 1.0, %v817
    %v819 = vtanh.pop %v799
    %v820 = vmul.f32 %v818, 0.0
    %822 = vrot.lane.b32.xlu0 %v819, 64
    %v823 = vpop.permute.xlu0 %822
    %v825 = vmul.f32 %v818, %v823
    %827 = vrot.lane.b32.xlu0 %v825, 32
    %v828 = vpop.permute.xlu0 %827
    %v830 = vadd.f32 %v820, %v828
    %v831 = vtanh.pop %v830
    %833 = vrot.lane.b32.xlu0 %v831, 64
    %v834 = vpop.permute.xlu0 %833
    %v836 = vmul.f32 %v818, %v834
    %838 = vrot.lane.b32.xlu0 %v836, 32
    %v839 = vpop.permute.xlu0 %838
    %841 = vst.msk [vmem:[#allocation3] sm:$0xff] %vm64, %v839
    %v842 = vld [vmem:[%s209] sm:$0xff]
    %v843 = vsel %vm64, %v839, 0
    %845 = vmatpush.msra.mxu0 0.0
    %846 = vmatpush.msra.mxu0 0.0
    %847 = vmatpush.msra.mxu0 0.0
    %848 = vmatpush.msra.mxu0 0.0
    %849 = vmatpush.msra.mxu0 0.0
    %850 = vmatpush.msra.mxu0 0.0
    %851 = vmatpush.msra.mxu0 0.0
    %852 = vmatpush.msra.mxu0 0.0
    %853 = vmatpush.msra.mxu0 0.0
    %854 = vmatpush.msra.mxu0 0.0
    %855 = vmatpush.msra.mxu0 0.0
    %856 = vmatpush.msra.mxu0 0.0
    %857 = vmatpush.msra.mxu0 %v777
    %858 = vmatpush.msra.mxu0 %v776
    %859 = vmatpush.msra.mxu0 %v775
    %860 = vmatpush.msra.mxu0 %v774
    %861 = vmatmul.f32.gmra.mxu0 %v843
    %v862 = vpop.f32.mrf.mxu0
    %v863 = vadd.f32 0.0, %v862
    %864 = vdwg.mxu0
    %v865 = vadd.f32 %v842, %v863
    %v866 = vxor.u32 %v865, 2147483648
    %v867 = vmul.f32 %v866, 1.442695
    %v868 = vpow.pop %v867
    %v869 = vadd.f32 %v868, 1.0
    %v870 = vrcp.pop %v869
    %v871 = vmul.f32 %v869, %v870
    %v872 = vsub.f32 1.0, %v871
    %v873 = vmul.f32 %v870, %v872
    %v874 = vadd.f32 %v870, %v873
    %vm875 = vweird.f32 %v869
    %vm876 = vweird.f32 %v870
    %vm877 = vmor %vm875, %vm876
    %v878 = vsel %vm877, %v870, %v874
    %v879 = vand.u32 2147483647, %v869
    %vm880 = vcmp.eq.f32.partialorder %v879, 8.507059e+37
    %v881 = vand.u32 %v869, 2147483648
    %v882 = vor.u32 1.1754944e-38, %v881
    %v883 = vsel %vm880, %v882, %v878
    %v884 = vmul.f32 1.0, %v883
    %v885 = vtanh.pop %v865
    %v886 = vmul.f32 %v884, %v830
    %888 = vrot.lane.b32.xlu0 %v885, 64
    %v889 = vpop.permute.xlu0 %888
    %v891 = vmul.f32 %v884, %v889
    %893 = vrot.lane.b32.xlu0 %v891, 32
    %v894 = vpop.permute.xlu0 %893
    %v896 = vadd.f32 %v886, %v894
    %v897 = vtanh.pop %v896
    %899 = vrot.lane.b32.xlu0 %v897, 64
    %v900 = vpop.permute.xlu0 %899
    %v902 = vmul.f32 %v884, %v900
    %904 = vrot.lane.b32.xlu0 %v902, 32
    %v905 = vpop.permute.xlu0 %904
    %907 = vst.msk [vmem:[%s275] sm:$0xff] %vm64, %v905
    %v908 = vld [vmem:[%s277] sm:$0xff]
    %v909 = vsel %vm64, %v905, 0
    %911 = vmatpush.msra.mxu0 0.0
    %912 = vmatpush.msra.mxu0 0.0
    %913 = vmatpush.msra.mxu0 0.0
    %914 = vmatpush.msra.mxu0 0.0
    %915 = vmatpush.msra.mxu0 0.0
    %916 = vmatpush.msra.mxu0 0.0
    %917 = vmatpush.msra.mxu0 0.0
    %918 = vmatpush.msra.mxu0 0.0
    %919 = vmatpush.msra.mxu0 0.0
    %920 = vmatpush.msra.mxu0 0.0
    %921 = vmatpush.msra.mxu0 0.0
    %922 = vmatpush.msra.mxu0 0.0
    %923 = vmatpush.msra.mxu0 %v777
    %924 = vmatpush.msra.mxu0 %v776
    %925 = vmatpush.msra.mxu0 %v775
    %926 = vmatpush.msra.mxu0 %v774
    %927 = vmatmul.f32.gmra.mxu0 %v909
    %v928 = vpop.f32.mrf.mxu0
    %v929 = vadd.f32 0.0, %v928
    %930 = vdwg.mxu0
    %v931 = vadd.f32 %v908, %v929
    %v932 = vxor.u32 %v931, 2147483648
    %v933 = vmul.f32 %v932, 1.442695
    %v934 = vpow.pop %v933
    %v935 = vadd.f32 %v934, 1.0
    %v936 = vrcp.pop %v935
    %v937 = vmul.f32 %v935, %v936
    %v938 = vsub.f32 1.0, %v937
    %v939 = vmul.f32 %v936, %v938
    %v940 = vadd.f32 %v936, %v939
    %vm941 = vweird.f32 %v935
    %vm942 = vweird.f32 %v936
    %vm943 = vmor %vm941, %vm942
    %v944 = vsel %vm943, %v936, %v940
    %v945 = vand.u32 2147483647, %v935
    %vm946 = vcmp.eq.f32.partialorder %v945, 8.507059e+37
    %v947 = vand.u32 %v935, 2147483648
    %v948 = vor.u32 1.1754944e-38, %v947
    %v949 = vsel %vm946, %v948, %v944
    %v950 = vmul.f32 1.0, %v949
    %v951 = vtanh.pop %v931
    %v952 = vmul.f32 %v950, %v896
    %954 = vrot.lane.b32.xlu0 %v951, 64
    %v955 = vpop.permute.xlu0 %954
    %v957 = vmul.f32 %v950, %v955
    %959 = vrot.lane.b32.xlu0 %v957, 32
    %v960 = vpop.permute.xlu0 %959
    %v962 = vadd.f32 %v952, %v960
    %v963 = vtanh.pop %v962
    %965 = vrot.lane.b32.xlu0 %v963, 64
    %v966 = vpop.permute.xlu0 %965
    %v968 = vmul.f32 %v950, %v966
    %970 = vrot.lane.b32.xlu0 %v968, 32
    %v971 = vpop.permute.xlu0 %970
    %973 = vst.msk [vmem:[%s343] sm:$0xff] %vm64, %v971
    %v974 = vld [vmem:[%s345] sm:$0xff]
    %v975 = vsel %vm64, %v971, 0
    %977 = vmatpush.msra.mxu0 0.0
    %978 = vmatpush.msra.mxu0 0.0
    %979 = vmatpush.msra.mxu0 0.0
    %980 = vmatpush.msra.mxu0 0.0
    %981 = vmatpush.msra.mxu0 0.0
    %982 = vmatpush.msra.mxu0 0.0
    %983 = vmatpush.msra.mxu0 0.0
    %984 = vmatpush.msra.mxu0 0.0
    %985 = vmatpush.msra.mxu0 0.0
    %986 = vmatpush.msra.mxu0 0.0
    %987 = vmatpush.msra.mxu0 0.0
    %988 = vmatpush.msra.mxu0 0.0
    %989 = vmatpush.msra.mxu0 %v777
    %990 = vmatpush.msra.mxu0 %v776
    %991 = vmatpush.msra.mxu0 %v775
    %992 = vmatpush.msra.mxu0 %v774
    %993 = vmatmul.f32.gmra.mxu0 %v975
    %v994 = vpop.f32.mrf.mxu0
    %v995 = vadd.f32 0.0, %v994
    %996 = vdwg.mxu0
    %v997 = vadd.f32 %v974, %v995
    %v998 = vxor.u32 %v997, 2147483648
    %v999 = vmul.f32 %v998, 1.442695
    %v1000 = vpow.pop %v999
    %v1001 = vadd.f32 %v1000, 1.0
    %v1002 = vrcp.pop %v1001
    %v1003 = vmul.f32 %v1001, %v1002
    %v1004 = vsub.f32 1.0, %v1003
    %v1005 = vmul.f32 %v1002, %v1004
    %v1006 = vadd.f32 %v1002, %v1005
    %vm1007 = vweird.f32 %v1001
    %vm1008 = vweird.f32 %v1002
    %vm1009 = vmor %vm1007, %vm1008
    %v1010 = vsel %vm1009, %v1002, %v1006
    %v1011 = vand.u32 2147483647, %v1001
    %vm1012 = vcmp.eq.f32.partialorder %v1011, 8.507059e+37
    %v1013 = vand.u32 %v1001, 2147483648
    %v1014 = vor.u32 1.1754944e-38, %v1013
    %v1015 = vsel %vm1012, %v1014, %v1010
    %v1016 = vmul.f32 1.0, %v1015
    %v1017 = vtanh.pop %v997
    %v1018 = vmul.f32 %v1016, %v962
    %1020 = vrot.lane.b32.xlu0 %v1017, 64
    %v1021 = vpop.permute.xlu0 %1020
    %v1023 = vmul.f32 %v1016, %v1021
    %1025 = vrot.lane.b32.xlu0 %v1023, 32
    %v1026 = vpop.permute.xlu0 %1025
    %v1028 = vadd.f32 %v1018, %v1026
    %v1029 = vtanh.pop %v1028
    %1031 = vrot.lane.b32.xlu0 %v1029, 64
    %v1032 = vpop.permute.xlu0 %1031
    %v1034 = vmul.f32 %v1016, %v1032
    %1036 = vrot.lane.b32.xlu0 %v1034, 32
    %v1037 = vpop.permute.xlu0 %1036
    %1039 = vst.msk [vmem:[%s411] sm:$0xff] %vm64, %v1037
    %v1040 = vld [vmem:[%s413] sm:$0xff]
    %v1041 = vsel %vm64, %v1037, 0
    %1043 = vmatpush.msra.mxu0 0.0
    %1044 = vmatpush.msra.mxu0 0.0
    %1045 = vmatpush.msra.mxu0 0.0
    %1046 = vmatpush.msra.mxu0 0.0
    %1047 = vmatpush.msra.mxu0 0.0
    %1048 = vmatpush.msra.mxu0 0.0
    %1049 = vmatpush.msra.mxu0 0.0
    %1050 = vmatpush.msra.mxu0 0.0
    %1051 = vmatpush.msra.mxu0 0.0
    %1052 = vmatpush.msra.mxu0 0.0
    %1053 = vmatpush.msra.mxu0 0.0
    %1054 = vmatpush.msra.mxu0 0.0
    %1055 = vmatpush.msra.mxu0 %v777
    %1056 = vmatpush.msra.mxu0 %v776
    %1057 = vmatpush.msra.mxu0 %v775
    %1058 = vmatpush.msra.mxu0 %v774
    %1059 = vmatmul.f32.gmra.mxu0 %v1041
    %v1060 = vpop.f32.mrf.mxu0
    %v1061 = vadd.f32 0.0, %v1060
    %1062 = vdwg.mxu0
    %v1063 = vadd.f32 %v1040, %v1061
    %v1064 = vxor.u32 %v1063, 2147483648
    %v1065 = vmul.f32 %v1064, 1.442695
    %v1066 = vpow.pop %v1065
    %v1067 = vadd.f32 %v1066, 1.0
    %v1068 = vrcp.pop %v1067
    %v1069 = vmul.f32 %v1067, %v1068
    %v1070 = vsub.f32 1.0, %v1069
    %v1071 = vmul.f32 %v1068, %v1070
    %v1072 = vadd.f32 %v1068, %v1071
    %vm1073 = vweird.f32 %v1067
    %vm1074 = vweird.f32 %v1068
    %vm1075 = vmor %vm1073, %vm1074
    %v1076 = vsel %vm1075, %v1068, %v1072
    %v1077 = vand.u32 2147483647, %v1067
    %vm1078 = vcmp.eq.f32.partialorder %v1077, 8.507059e+37
    %v1079 = vand.u32 %v1067, 2147483648
    %v1080 = vor.u32 1.1754944e-38, %v1079
    %v1081 = vsel %vm1078, %v1080, %v1076
    %v1082 = vmul.f32 1.0, %v1081
    %v1083 = vtanh.pop %v1063
    %v1084 = vmul.f32 %v1082, %v1028
    %1086 = vrot.lane.b32.xlu0 %v1083, 64
    %v1087 = vpop.permute.xlu0 %1086
    %v1089 = vmul.f32 %v1082, %v1087
    %1091 = vrot.lane.b32.xlu0 %v1089, 32
    %v1092 = vpop.permute.xlu0 %1091
    %v1094 = vadd.f32 %v1084, %v1092
    %v1095 = vtanh.pop %v1094
    %1097 = vrot.lane.b32.xlu0 %v1095, 64
    %v1098 = vpop.permute.xlu0 %1097
    %v1100 = vmul.f32 %v1082, %v1098
    %1102 = vrot.lane.b32.xlu0 %v1100, 32
    %v1103 = vpop.permute.xlu0 %1102
    %1105 = vst.msk [vmem:[%s479] sm:$0xff] %vm64, %v1103
    %v1106 = vld [vmem:[%s481] sm:$0xff]
    %v1107 = vsel %vm64, %v1103, 0
    %1109 = vmatpush.msra.mxu0 0.0
    %1110 = vmatpush.msra.mxu0 0.0
    %1111 = vmatpush.msra.mxu0 0.0
    %1112 = vmatpush.msra.mxu0 0.0
    %1113 = vmatpush.msra.mxu0 0.0
    %1114 = vmatpush.msra.mxu0 0.0
    %1115 = vmatpush.msra.mxu0 0.0
    %1116 = vmatpush.msra.mxu0 0.0
    %1117 = vmatpush.msra.mxu0 0.0
    %1118 = vmatpush.msra.mxu0 0.0
    %1119 = vmatpush.msra.mxu0 0.0
    %1120 = vmatpush.msra.mxu0 0.0
    %1121 = vmatpush.msra.mxu0 %v777
    %1122 = vmatpush.msra.mxu0 %v776
    %1123 = vmatpush.msra.mxu0 %v775
    %1124 = vmatpush.msra.mxu0 %v774
    %1125 = vmatmul.f32.gmra.mxu0 %v1107
    %v1126 = vpop.f32.mrf.mxu0
    %v1127 = vadd.f32 0.0, %v1126
    %1128 = vdwg.mxu0
    %v1129 = vadd.f32 %v1106, %v1127
    %v1130 = vxor.u32 %v1129, 2147483648
    %v1131 = vmul.f32 %v1130, 1.442695
    %v1132 = vpow.pop %v1131
    %v1133 = vadd.f32 %v1132, 1.0
    %v1134 = vrcp.pop %v1133
    %v1135 = vmul.f32 %v1133, %v1134
    %v1136 = vsub.f32 1.0, %v1135
    %v1137 = vmul.f32 %v1134, %v1136
    %v1138 = vadd.f32 %v1134, %v1137
    %vm1139 = vweird.f32 %v1133
    %vm1140 = vweird.f32 %v1134
    %vm1141 = vmor %vm1139, %vm1140
    %v1142 = vsel %vm1141, %v1134, %v1138
    %v1143 = vand.u32 2147483647, %v1133
    %vm1144 = vcmp.eq.f32.partialorder %v1143, 8.507059e+37
    %v1145 = vand.u32 %v1133, 2147483648
    %v1146 = vor.u32 1.1754944e-38, %v1145
    %v1147 = vsel %vm1144, %v1146, %v1142
    %v1148 = vmul.f32 1.0, %v1147
    %v1149 = vtanh.pop %v1129
    %v1150 = vmul.f32 %v1148, %v1094
    %1152 = vrot.lane.b32.xlu0 %v1149, 64
    %v1153 = vpop.permute.xlu0 %1152
    %v1155 = vmul.f32 %v1148, %v1153
    %1157 = vrot.lane.b32.xlu0 %v1155, 32
    %v1158 = vpop.permute.xlu0 %1157
    %v1160 = vadd.f32 %v1150, %v1158
    %v1161 = vtanh.pop %v1160
    %1163 = vrot.lane.b32.xlu0 %v1161, 64
    %v1164 = vpop.permute.xlu0 %1163
    %v1166 = vmul.f32 %v1148, %v1164
    %1168 = vrot.lane.b32.xlu0 %v1166, 32
    %v1169 = vpop.permute.xlu0 %1168
    %1171 = vst.msk [vmem:[%s547] sm:$0xff] %vm64, %v1169
    %v1172 = vld [vmem:[%s549] sm:$0xff]
    %v1173 = vsel %vm64, %v1169, 0
    %1175 = vmatpush.msra.mxu0 0.0
    %1176 = vmatpush.msra.mxu0 0.0
    %1177 = vmatpush.msra.mxu0 0.0
    %1178 = vmatpush.msra.mxu0 0.0
    %1179 = vmatpush.msra.mxu0 0.0
    %1180 = vmatpush.msra.mxu0 0.0
    %1181 = vmatpush.msra.mxu0 0.0
    %1182 = vmatpush.msra.mxu0 0.0
    %1183 = vmatpush.msra.mxu0 0.0
    %1184 = vmatpush.msra.mxu0 0.0
    %1185 = vmatpush.msra.mxu0 0.0
    %1186 = vmatpush.msra.mxu0 0.0
    %1187 = vmatpush.msra.mxu0 %v777
    %1188 = vmatpush.msra.mxu0 %v776
    %1189 = vmatpush.msra.mxu0 %v775
    %1190 = vmatpush.msra.mxu0 %v774
    %1191 = vmatmul.f32.gmra.mxu0 %v1173
    %v1192 = vpop.f32.mrf.mxu0
    %v1193 = vadd.f32 0.0, %v1192
    %1194 = vdwg.mxu0
    %v1195 = vadd.f32 %v1172, %v1193
    %v1196 = vxor.u32 %v1195, 2147483648
    %v1197 = vmul.f32 %v1196, 1.442695
    %v1198 = vpow.pop %v1197
    %v1199 = vadd.f32 %v1198, 1.0
    %v1200 = vrcp.pop %v1199
    %v1201 = vmul.f32 %v1199, %v1200
    %v1202 = vsub.f32 1.0, %v1201
    %v1203 = vmul.f32 %v1200, %v1202
    %v1204 = vadd.f32 %v1200, %v1203
    %vm1205 = vweird.f32 %v1199
    %vm1206 = vweird.f32 %v1200
    %vm1207 = vmor %vm1205, %vm1206
    %v1208 = vsel %vm1207, %v1200, %v1204
    %v1209 = vand.u32 2147483647, %v1199
    %vm1210 = vcmp.eq.f32.partialorder %v1209, 8.507059e+37
    %v1211 = vand.u32 %v1199, 2147483648
    %v1212 = vor.u32 1.1754944e-38, %v1211
    %v1213 = vsel %vm1210, %v1212, %v1208
    %v1214 = vmul.f32 1.0, %v1213
    %v1215 = vtanh.pop %v1195
    %v1216 = vmul.f32 %v1214, %v1160
    %1218 = vrot.lane.b32.xlu0 %v1215, 64
    %v1219 = vpop.permute.xlu0 %1218
    %v1221 = vmul.f32 %v1214, %v1219
    %1223 = vrot.lane.b32.xlu0 %v1221, 32
    %v1224 = vpop.permute.xlu0 %1223
    %v1226 = vadd.f32 %v1216, %v1224
    %v1227 = vtanh.pop %v1226
    %1229 = vrot.lane.b32.xlu0 %v1227, 64
    %v1230 = vpop.permute.xlu0 %1229
    %v1232 = vmul.f32 %v1214, %v1230
    %1234 = vrot.lane.b32.xlu0 %v1232, 32
    %v1235 = vpop.permute.xlu0 %1234
    %1237 = vst.msk [vmem:[%s615] sm:$0xff] %vm64, %v1235
    %v1238 = vld [vmem:[%s617] sm:$0xff]
    %v1239 = vsel %vm64, %v1235, 0
    %1241 = vmatpush.msra.mxu0 0.0
    %1242 = vmatpush.msra.mxu0 0.0
    %1243 = vmatpush.msra.mxu0 0.0
    %1244 = vmatpush.msra.mxu0 0.0
    %1245 = vmatpush.msra.mxu0 0.0
    %1246 = vmatpush.msra.mxu0 0.0
    %1247 = vmatpush.msra.mxu0 0.0
    %1248 = vmatpush.msra.mxu0 0.0
    %1249 = vmatpush.msra.mxu0 0.0
    %1250 = vmatpush.msra.mxu0 0.0
    %1251 = vmatpush.msra.mxu0 0.0
    %1252 = vmatpush.msra.mxu0 0.0
    %1253 = vmatpush.msra.mxu0 %v777
    %1254 = vmatpush.msra.mxu0 %v776
    %1255 = vmatpush.msra.mxu0 %v775
    %1256 = vmatpush.msra.mxu0 %v774
    %1257 = vmatmul.f32.gmra.mxu0 %v1239
    %v1258 = vpop.f32.mrf.mxu0
    %v1259 = vadd.f32 0.0, %v1258
    %1260 = vdwg.mxu0
    %v1261 = vadd.f32 %v1238, %v1259
    %v1262 = vxor.u32 %v1261, 2147483648
    %v1263 = vmul.f32 %v1262, 1.442695
    %v1264 = vpow.pop %v1263
    %v1265 = vadd.f32 %v1264, 1.0
    %v1266 = vrcp.pop %v1265
    %v1267 = vmul.f32 %v1265, %v1266
    %v1268 = vsub.f32 1.0, %v1267
    %v1269 = vmul.f32 %v1266, %v1268
    %v1270 = vadd.f32 %v1266, %v1269
    %vm1271 = vweird.f32 %v1265
    %vm1272 = vweird.f32 %v1266
    %vm1273 = vmor %vm1271, %vm1272
    %v1274 = vsel %vm1273, %v1266, %v1270
    %v1275 = vand.u32 2147483647, %v1265
    %vm1276 = vcmp.eq.f32.partialorder %v1275, 8.507059e+37
    %v1277 = vand.u32 %v1265, 2147483648
    %v1278 = vor.u32 1.1754944e-38, %v1277
    %v1279 = vsel %vm1276, %v1278, %v1274
    %v1280 = vmul.f32 1.0, %v1279
    %v1281 = vtanh.pop %v1261
    %v1282 = vmul.f32 %v1280, %v1226
    %1284 = vrot.lane.b32.xlu0 %v1281, 64
    %v1285 = vpop.permute.xlu0 %1284
    %v1287 = vmul.f32 %v1280, %v1285
    %1289 = vrot.lane.b32.xlu0 %v1287, 32
    %v1290 = vpop.permute.xlu0 %1289
    %v1292 = vadd.f32 %v1282, %v1290
    %v1293 = vtanh.pop %v1292
    %1295 = vrot.lane.b32.xlu0 %v1293, 64
    %v1296 = vpop.permute.xlu0 %1295
    %v1298 = vmul.f32 %v1280, %v1296
    %1300 = vrot.lane.b32.xlu0 %v1298, 32
    %v1301 = vpop.permute.xlu0 %1300
    %1303 = vst.msk [vmem:[%s683] sm:$0xff] %vm64, %v1301
    %v1304 = vtanh.pop %v1298
    %v1305 = vld [vmem:[%s7] sm:$0xff]
    %v1306 = vld [vmem:[%s7 + $0x8] sm:$0xff]
    %v1307 = vld [vmem:[%s7 + $0x10] sm:$0xff]
    %v1308 = vld [vmem:[%s7 + $0x18] sm:$0xff]
    %v1309 = vld [vmem:[%s8] sm:$0x1]
    %v1311 = vperm.slane %v1309, 0
    %1314 = vrot.lane.b32.xlu0 %v1304, 32
    %v1315 = vpop.permute.xlu0 %1314
    %v1316 = vsel %vm64, %v1315, 0
    %1318 = vmatpush.msra.mxu0 0.0
    %1319 = vmatpush.msra.mxu0 0.0
    %1320 = vmatpush.msra.mxu0 0.0
    %1321 = vmatpush.msra.mxu0 0.0
    %1322 = vmatpush.msra.mxu0 0.0
    %1323 = vmatpush.msra.mxu0 0.0
    %1324 = vmatpush.msra.mxu0 0.0
    %1325 = vmatpush.msra.mxu0 0.0
    %1326 = vmatpush.msra.mxu0 0.0
    %1327 = vmatpush.msra.mxu0 0.0
    %1328 = vmatpush.msra.mxu0 0.0
    %1329 = vmatpush.msra.mxu0 0.0
    %1330 = vmatpush.msra.mxu0 %v1308
    %1331 = vmatpush.msra.mxu0 %v1307
    %1332 = vmatpush.msra.mxu0 %v1306
    %1333 = vmatpush.msra.mxu0 %v1305
    %1334 = vmatmul.f32.gmra.mxu0 %v1316
    %v1335 = vpop.f32.mrf.mxu0
    %v1336 = vadd.f32 %v1311, %v1335
    %1337 = vdwg.mxu0
    %vm1338 = vcmask 31744
    %1339 = vst.msk [vmem:[%s9] sm:$0xff] %vm1338, %v1336
    // Predicated region
    $region42: #{tpu_custom_call.1} parent=1 // pred_check
      _
    $region43: #{tpu_custom_call.1} parent=1 // pred_check_branch
      %1341 = sbr.rel (0) target = $region45
    $region44: #{tpu_custom_call.1} parent=1 // pred_region
      _
    $region45: #{tpu_custom_call.1} parent=1 // pred_fallthru
      _
    // Predicated region
    $region46: #{tpu_custom_call.1} parent=1 // pred_check
      _
    $region47: #{tpu_custom_call.1} parent=1 // pred_check_branch
      %1343 = sbr.rel (0) target = $region49
    $region48: #{tpu_custom_call.1} parent=1 // pred_region
      _
    $region49: #{tpu_custom_call.1} parent=1 // pred_fallthru
      _
    %1344 = vsyncpa [#allocation5], 1

</llo_original>
